<compile_context>
chip_gen: v6e
topology: v6e:2x2x1
jax: 0.10.0
libtpu: 0.0.40
codegen_flags: <defaults>
</compile_context>

<pallas_src>
import jax
import jax.numpy as jnp
from jax.experimental import pallas as pl
from jax.experimental.pallas import tpu as pltpu

# ---- model hyper-parameters (consistent with the module __init__) ----
BRANCH_IN = 16     # branch_input_dim
TRUNK_IN  = 8      # trunk_input_dim
HIDDEN    = 32     # hidden_dim
OUT_DIM   = 16     # output_dim
DEPTH     = 3      # branch_depth == trunk_depth (mixing loop runs DEPTH times)

IN_CAT = BRANCH_IN + TRUNK_IN     # 24
H2     = 2 * HIDDEN               # 64

LANE_ALIGN = 256                  # MXU N width on v6e/v7x (multiple of 128 for v5e)
MAX_TILE_B = 4096                 # VMEM-aware lane-tile cap (fits v7x's 64 MiB)

BATCH = 512                       # lane-filling test batch -> 2 tiles of 256


# -----------------------------------------------------------------------------
# Kernel: whole forward pass for one batch tile, batch along the lane axis.
# -----------------------------------------------------------------------------
def _deeponet_kernel(ut_ref, yt_ref, w1u_ref, w1y_ref, b1_ref,
                     wh_ref, bh_ref, wf_ref, bf_ref, out_ref):
    # Fused first layer, output rows = [B0 | T0 | U | V]  (4H = 128 rows).
    # Two dots (one per input) so the wrapper never concatenates [u|y] in HBM.
    h = (jnp.dot(w1u_ref[...], ut_ref[...], preferred_element_type=jnp.float32)
         + jnp.dot(w1y_ref[...], yt_ref[...], preferred_element_type=jnp.float32)
         + b1_ref[...])
    h = jnp.maximum(h, 0.0)                                    # ReLU  (4H, TB)

    bt = h[0:H2, :]                       # [B0 ; T0]            (2H, TB)
    uh = h[H2:H2 + HIDDEN, :]             # U                    (H, TB)
    vh = h[H2 + HIDDEN:, :]               # V                    (H, TB)

    # Loop-invariant doubled slabs, built once (outside the k-loop).
    umv = uh - vh
    umv2 = jnp.concatenate([umv, umv], axis=0)                 # [U-V ; U-V] (2H, TB)
    v2 = jnp.concatenate([vh, vh], axis=0)                     # [V ; V]     (2H, TB)

    # k = 0 mixing:  u = B*U + (1-B)*V = B*(U-V) + V  (same for y with T)
    s = bt * umv2 + v2                                         # state [u ; y]

    # k = 1 .. DEPTH-1 : fused block-diagonal hidden layers, statically unrolled.
    for k in range(DEPTH - 1):
        bt = jnp.maximum(
            jnp.dot(wh_ref[k], s, preferred_element_type=jnp.float32)
            + bh_ref[k], 0.0)
        s = bt * umv2 + v2

    # Fused final projections -> rows [branch_out ; trunk_out]  (2*OUT_DIM, TB).
    f = jnp.dot(wf_ref[...], s, preferred_element_type=jnp.float32) + bf_ref[...]

    # Inner product over output_dim (sublane reduce) -> lane-dense (1, TB) slab.
    out_ref[...] = jnp.sum(f[:OUT_DIM, :] * f[OUT_DIM:, :], axis=0,
                           keepdims=True)


# -----------------------------------------------------------------------------
# Batch planning: lane-filling, 256-aligned tiles, >=2 tiles when possible.
# -----------------------------------------------------------------------------
def _round_up(x, m):
    return ((x + m - 1) // m) * m


def _plan_batch(batch, tile_b=None):
    """Return (padded_batch, tile_b)."""
    if tile_b is not None:
        assert tile_b % LANE_ALIGN == 0, \
            f"tile_b sits on the lane axis: must be a multiple of {LANE_ALIGN}"
        return _round_up(batch, tile_b), tile_b
    padded = _round_up(batch, LANE_ALIGN)
    if padded <= LANE_ALIGN:
        return padded, padded                        # single lane-filling tile
    n_tiles = max(2, pl.cdiv(padded, MAX_TILE_B))    # >=2 tiles -> both TCs on v7x
    tile_b = _round_up(pl.cdiv(padded, n_tiles), LANE_ALIGN)
    return n_tiles * tile_b, tile_b


# -----------------------------------------------------------------------------
# Wrapper
# -----------------------------------------------------------------------------
def modified_deeponet(u, y, packed, *, tile_b=None):
    batch = u.shape[0]
    padded_batch, tile_b = _plan_batch(batch, tile_b)
    grid = (padded_batch // tile_b,)

    # Feature-major activations (batch on lanes).  No [u|y] concat slab: u^T and
    # y^T go in separately; the kernel splits the first-layer dot accordingly.
    def pad_t(a):
        if padded_batch != batch:
            a = jnp.pad(a, ((0, padded_batch - batch), (0, 0)))
        return a.T

    ut, yt = pad_t(u), pad_t(y)

    w1u, w1y, b1, wh, bh, wf, bf = (packed[k] for k in
                                    ("w1u", "w1y", "b1", "wh", "bh", "wf", "bf"))

    def full_spec(shape):
        nd = len(shape)
        return pl.BlockSpec(shape, lambda i, _n=nd: (0,) * _n)

    flops_per_sample = 2 * (4 * HIDDEN * IN_CAT + (DEPTH - 1) * H2 * H2
                            + 2 * OUT_DIM * H2) + 10 * H2
    weight_bytes = 4 * (4 * HIDDEN * IN_CAT + (DEPTH - 1) * H2 * H2
                        + 2 * OUT_DIM * H2 + 4 * HIDDEN + (DEPTH - 1) * H2
                        + 2 * OUT_DIM)
    cost = pl.CostEstimate(
        flops=flops_per_sample * padded_batch,
        transcendentals=0,
        bytes_accessed=weight_bytes + 4 * (IN_CAT + 1) * padded_batch)

    out = pl.pallas_call(
        _deeponet_kernel,
        out_shape=jax.ShapeDtypeStruct((1, padded_batch), jnp.float32),
        grid=grid,
        in_specs=[pl.BlockSpec((BRANCH_IN, tile_b), lambda i: (0, i)),
                  pl.BlockSpec((TRUNK_IN, tile_b), lambda i: (0, i)),
                  full_spec(w1u.shape), full_spec(w1y.shape), full_spec(b1.shape),
                  full_spec(wh.shape), full_spec(bh.shape),
                  full_spec(wf.shape), full_spec(bf.shape)],
        out_specs=pl.BlockSpec((1, tile_b), lambda i: (0, i)),
        compiler_params=pltpu.CompilerParams(
            dimension_semantics=("parallel",),
            vmem_limit_bytes=32 * 1024 * 1024),
        cost_estimate=cost,
    )(ut, yt, w1u, w1y, b1, wh, bh, wf, bf)

    return out[0, :batch].reshape(batch, 1)          # back to (batch, 1)


# -----------------------------------------------------------------------------
# Parameter init (torch layout: weight = [out_features, in_features], bias = 0)
# -----------------------------------------------------------------------------
def _xavier(k, fan_out, fan_in):
    bound = (6.0 / (fan_in + fan_out)) ** 0.5
    return jax.random.uniform(k, (fan_out, fan_in), jnp.float32, -bound, bound)


def init_params(key):
    ks = jax.random.split(key, 2 + 2 * (DEPTH + 1))
    zeros = lambda n: jnp.zeros((n,), jnp.float32)
    branch_dims = ([(HIDDEN, BRANCH_IN)] + [(HIDDEN, HIDDEN)] * (DEPTH - 1)
                   + [(OUT_DIM, HIDDEN)])
    trunk_dims = ([(HIDDEN, TRUNK_IN)] + [(HIDDEN, HIDDEN)] * (DEPTH - 1)
                  + [(OUT_DIM, HIDDEN)])
    p = {
        "U1_w": _xavier(ks[0], HIDDEN, BRANCH_IN), "U1_b": zeros(HIDDEN),
        "U2_w": _xavier(ks[1], HIDDEN, TRUNK_IN),  "U2_b": zeros(HIDDEN),
        "branch_w": [_xavier(ks[2 + i], *branch_dims[i])
                     for i in range(DEPTH + 1)],
        "branch_b": [zeros(branch_dims[i][0]) for i in range(DEPTH + 1)],
        "trunk_w": [_xavier(ks[2 + DEPTH + 1 + i], *trunk_dims[i])
                    for i in range(DEPTH + 1)],
        "trunk_b": [zeros(trunk_dims[i][0]) for i in range(DEPTH + 1)],
    }
    return p


def pack_params(p):
    """Pack the 18 per-layer tensors into 4 weight + 3 bias arrays."""
    H = HIDDEN

    # Fused first layer: output rows = [B0 | T0 | U | V]  (4H = 128 rows),
    # split by input so u^T / y^T never need concatenating in HBM.
    w1u = jnp.zeros((4 * H, BRANCH_IN), jnp.float32)
    w1u = w1u.at[0 * H:1 * H, :].set(p["branch_w"][0])   # B0  <- u
    w1u = w1u.at[2 * H:3 * H, :].set(p["U1_w"])          # U   <- u
    w1y = jnp.zeros((4 * H, TRUNK_IN), jnp.float32)
    w1y = w1y.at[1 * H:2 * H, :].set(p["trunk_w"][0])    # T0  <- y
    w1y = w1y.at[3 * H:4 * H, :].set(p["U2_w"])          # V   <- y
    b1 = jnp.concatenate([p["branch_b"][0], p["trunk_b"][0],
                          p["U1_b"], p["U2_b"]])[:, None]              # (4H, 1)

    # Hidden layers k = 1..DEPTH-1: block-diag(branch_w[k], trunk_w[k]).
    wh, bh = [], []
    for k in range(1, DEPTH):
        m = jnp.zeros((H2, H2), jnp.float32)
        m = m.at[:H, :H].set(p["branch_w"][k])
        m = m.at[H:, H:].set(p["trunk_w"][k])
        wh.append(m)
        bh.append(jnp.concatenate([p["branch_b"][k], p["trunk_b"][k]])[:, None])
    wh = jnp.stack(wh)                                             # (DEPTH-1, 2H, 2H)
    bh = jnp.stack(bh)                                             # (DEPTH-1, 2H, 1)

    # Final projections: block-diag(branch_w[-1], trunk_w[-1]) -> [bo ; to].
    wf = jnp.zeros((2 * OUT_DIM, H2), jnp.float32)
    wf = wf.at[:OUT_DIM, :H].set(p["branch_w"][DEPTH])
    wf = wf.at[OUT_DIM:, H:].set(p["trunk_w"][DEPTH])
    bf = jnp.concatenate([p["branch_b"][DEPTH], p["trunk_b"][DEPTH]])[:, None]

    return dict(w1u=w1u, w1y=w1y, b1=b1, wh=wh, bh=bh, wf=wf, bf=bf)


# -----------------------------------------------------------------------------
# Pure-JAX replica of ModifiedDeepONet.forward (uses the UNPACKED params).
# -----------------------------------------------------------------------------
def reference(u, y, p):
    act = jax.nn.relu
    lin = lambda x, w, b: x @ w.T + b
    U = act(lin(u, p["U1_w"], p["U1_b"]))
    V = act(lin(y, p["U2_w"], p["U2_b"]))
    for k in range(DEPTH):
        B = act(lin(u, p["branch_w"][k], p["branch_b"][k]))
        T = act(lin(y, p["trunk_w"][k], p["trunk_b"][k]))
        u = B * U + (1 - B) * V
        y = T * U + (1 - T) * V
    bo = lin(u, p["branch_w"][DEPTH], p["branch_b"][DEPTH])
    to = lin(y, p["trunk_w"][DEPTH], p["trunk_b"][DEPTH])
    return jnp.sum(bo * to, axis=-1, keepdims=True)


if __name__ == "__main__":
    key = jax.random.PRNGKey(0)
    k_u, k_y, k_p = jax.random.split(key, 3)

    params = init_params(k_p)
    packed = pack_params(params)

    # Main check: lane-filling batch, 2 grid tiles of 256 lanes ("parallel").
    u = jax.random.normal(k_u, (BATCH, BRANCH_IN), jnp.float32)
    y = jax.random.normal(k_y, (BATCH, TRUNK_IN), jnp.float32)
    out = jax.block_until_ready(modified_deeponet(u, y, packed))
    ref = reference(u, y, params)
    assert out.shape == (BATCH, 1), out.shape
    max_err = float(jnp.max(jnp.abs(out - ref)))
    assert jnp.allclose(out, ref, atol=5e-4, rtol=5e-4), max_err

    # Secondary check: odd batch exercises the zero-pad + output-slice path.
    odd = 100
    u2 = jax.random.normal(jax.random.PRNGKey(7), (odd, BRANCH_IN), jnp.float32)
    y2 = jax.random.normal(jax.random.PRNGKey(8), (odd, TRUNK_IN), jnp.float32)
    out2 = jax.block_until_ready(modified_deeponet(u2, y2, packed))
    ref2 = reference(u2, y2, params)
    assert out2.shape == (odd, 1), out2.shape
    max_err2 = float(jnp.max(jnp.abs(out2 - ref2)))
    assert jnp.allclose(out2, ref2, atol=5e-4, rtol=5e-4), max_err2

    print("KERNEL_OK")
</pallas_src>

<mosaic_0001>
module attributes {stable_mosaic.version = 11 : i64} {
  func.func @_deeponet_kernel(%arg0: i32, %arg1: memref<16x256xf32, #tpu.memory_space<vmem>>, %arg2: memref<8x256xf32, #tpu.memory_space<vmem>>, %arg3: memref<128x16xf32, #tpu.memory_space<vmem>>, %arg4: memref<128x8xf32, #tpu.memory_space<vmem>>, %arg5: memref<128x1xf32, #tpu.memory_space<vmem>>, %arg6: memref<2x64x64xf32, #tpu.memory_space<vmem>>, %arg7: memref<2x64x1xf32, #tpu.memory_space<vmem>>, %arg8: memref<32x64xf32, #tpu.memory_space<vmem>>, %arg9: memref<32x1xf32, #tpu.memory_space<vmem>>, %arg10: memref<1x256xf32, #tpu.memory_space<vmem>>) attributes {dimension_semantics = [#tpu.dimension_semantics<parallel>], iteration_bounds = array<i64: 2>, scalar_prefetch = 0 : i64, scratch_operands = 0 : i64, tpu.core_type = #tpu.core_type<tc>, window_params = [{transform_indices = @transform_0, window_bounds = array<i64: 16, 256>}, {transform_indices = @transform_1, window_bounds = array<i64: 8, 256>}, {pipeline_mode = #tpu.pipeline_mode<synchronous>, transform_indices = @transform_2, window_bounds = array<i64: 128, 16>}, {pipeline_mode = #tpu.pipeline_mode<synchronous>, transform_indices = @transform_3, window_bounds = array<i64: 128, 8>}, {pipeline_mode = #tpu.pipeline_mode<synchronous>, transform_indices = @transform_4, window_bounds = array<i64: 128, 1>}, {pipeline_mode = #tpu.pipeline_mode<synchronous>, transform_indices = @transform_5, window_bounds = array<i64: 2, 64, 64>}, {pipeline_mode = #tpu.pipeline_mode<synchronous>, transform_indices = @transform_6, window_bounds = array<i64: 2, 64, 1>}, {pipeline_mode = #tpu.pipeline_mode<synchronous>, transform_indices = @transform_7, window_bounds = array<i64: 32, 64>}, {pipeline_mode = #tpu.pipeline_mode<synchronous>, transform_indices = @transform_8, window_bounds = array<i64: 32, 1>}, {transform_indices = @transform_9, window_bounds = array<i64: 1, 256>}]} {
    %c0 = arith.constant 0 : index
    %c0_0 = arith.constant 0 : index
    %0 = vector.load %arg3[%c0, %c0_0] : memref<128x16xf32, #tpu.memory_space<vmem>>, vector<128x16xf32>
    %c0_1 = arith.constant 0 : index
    %c0_2 = arith.constant 0 : index
    %1 = vector.load %arg1[%c0_1, %c0_2] : memref<16x256xf32, #tpu.memory_space<vmem>>, vector<16x256xf32>
    %cst = arith.constant dense<0.000000e+00> : vector<128x256xf32>
    %2 = tpu.matmul %0, %1, %cst {dimension_numbers = #tpu.dot_dimension_numbers<[1], [0], [0], [1], [0, 0, 1, 1], [], []>} : vector<128x16xf32>, vector<16x256xf32>, vector<128x256xf32> -> vector<128x256xf32>
    %c0_3 = arith.constant 0 : index
    %c0_4 = arith.constant 0 : index
    %3 = vector.load %arg4[%c0_3, %c0_4] : memref<128x8xf32, #tpu.memory_space<vmem>>, vector<128x8xf32>
    %c0_5 = arith.constant 0 : index
    %c0_6 = arith.constant 0 : index
    %4 = vector.load %arg2[%c0_5, %c0_6] : memref<8x256xf32, #tpu.memory_space<vmem>>, vector<8x256xf32>
    %cst_7 = arith.constant dense<0.000000e+00> : vector<128x256xf32>
    %5 = tpu.matmul %3, %4, %cst_7 {dimension_numbers = #tpu.dot_dimension_numbers<[1], [0], [0], [1], [0, 0, 1, 1], [], []>} : vector<128x8xf32>, vector<8x256xf32>, vector<128x256xf32> -> vector<128x256xf32>
    %6 = arith.addf %2, %5 : vector<128x256xf32>
    %c0_8 = arith.constant 0 : index
    %c0_9 = arith.constant 0 : index
    %7 = vector.load %arg5[%c0_8, %c0_9] : memref<128x1xf32, #tpu.memory_space<vmem>>, vector<128x1xf32>
    %8 = vector.broadcast %7 : vector<128x1xf32> to vector<128x256xf32>
    %9 = arith.addf %6, %8 : vector<128x256xf32>
    %cst_10 = arith.constant 0.000000e+00 : f32
    %10 = vector.broadcast %cst_10 : f32 to vector<128x256xf32>
    %11 = arith.maximumf %9, %10 : vector<128x256xf32>
    %12 = vector.extract_strided_slice %11 {offsets = [0, 0], sizes = [64, 256], strides = [1, 1]} : vector<128x256xf32> to vector<64x256xf32>
    %13 = vector.extract_strided_slice %11 {offsets = [64, 0], sizes = [32, 256], strides = [1, 1]} : vector<128x256xf32> to vector<32x256xf32>
    %14 = vector.extract_strided_slice %11 {offsets = [96, 0], sizes = [32, 256], strides = [1, 1]} : vector<128x256xf32> to vector<32x256xf32>
    %15 = arith.subf %13, %14 : vector<32x256xf32>
    %16 = tpu.concatenate %15, %15 in 0 : vector<32x256xf32>, vector<32x256xf32> -> vector<64x256xf32>
    %17 = tpu.concatenate %14, %14 in 0 : vector<32x256xf32>, vector<32x256xf32> -> vector<64x256xf32>
    %18 = arith.mulf %12, %16 : vector<64x256xf32>
    %19 = arith.addf %18, %17 : vector<64x256xf32>
    %c0_11 = arith.constant 0 : index
    %c0_12 = arith.constant 0 : index
    %c0_13 = arith.constant 0 : index
    %20 = vector.load %arg6[%c0_11, %c0_12, %c0_13] : memref<2x64x64xf32, #tpu.memory_space<vmem>>, vector<1x64x64xf32>
    %21 = vector.shape_cast %20 : vector<1x64x64xf32> to vector<64x64xf32>
    %cst_14 = arith.constant dense<0.000000e+00> : vector<64x256xf32>
    %22 = tpu.matmul %21, %19, %cst_14 {dimension_numbers = #tpu.dot_dimension_numbers<[1], [0], [0], [1], [0, 0, 1, 1], [], []>} : vector<64x64xf32>, vector<64x256xf32>, vector<64x256xf32> -> vector<64x256xf32>
    %c0_15 = arith.constant 0 : index
    %c0_16 = arith.constant 0 : index
    %c0_17 = arith.constant 0 : index
    %23 = vector.load %arg7[%c0_15, %c0_16, %c0_17] : memref<2x64x1xf32, #tpu.memory_space<vmem>>, vector<1x64x1xf32>
    %24 = vector.shape_cast %23 : vector<1x64x1xf32> to vector<64x1xf32>
    %25 = vector.broadcast %24 : vector<64x1xf32> to vector<64x256xf32>
    %26 = arith.addf %22, %25 : vector<64x256xf32>
    %cst_18 = arith.constant 0.000000e+00 : f32
    %27 = vector.broadcast %cst_18 : f32 to vector<64x256xf32>
    %28 = arith.maximumf %26, %27 : vector<64x256xf32>
    %29 = arith.mulf %28, %16 : vector<64x256xf32>
    %30 = arith.addf %29, %17 : vector<64x256xf32>
    %c1 = arith.constant 1 : index
    %c0_19 = arith.constant 0 : index
    %c0_20 = arith.constant 0 : index
    %31 = vector.load %arg6[%c1, %c0_19, %c0_20] : memref<2x64x64xf32, #tpu.memory_space<vmem>>, vector<1x64x64xf32>
    %32 = vector.shape_cast %31 : vector<1x64x64xf32> to vector<64x64xf32>
    %cst_21 = arith.constant dense<0.000000e+00> : vector<64x256xf32>
    %33 = tpu.matmul %32, %30, %cst_21 {dimension_numbers = #tpu.dot_dimension_numbers<[1], [0], [0], [1], [0, 0, 1, 1], [], []>} : vector<64x64xf32>, vector<64x256xf32>, vector<64x256xf32> -> vector<64x256xf32>
    %c1_22 = arith.constant 1 : index
    %c0_23 = arith.constant 0 : index
    %c0_24 = arith.constant 0 : index
    %34 = vector.load %arg7[%c1_22, %c0_23, %c0_24] : memref<2x64x1xf32, #tpu.memory_space<vmem>>, vector<1x64x1xf32>
    %35 = vector.shape_cast %34 : vector<1x64x1xf32> to vector<64x1xf32>
    %36 = vector.broadcast %35 : vector<64x1xf32> to vector<64x256xf32>
    %37 = arith.addf %33, %36 : vector<64x256xf32>
    %cst_25 = arith.constant 0.000000e+00 : f32
    %38 = vector.broadcast %cst_25 : f32 to vector<64x256xf32>
    %39 = arith.maximumf %37, %38 : vector<64x256xf32>
    %40 = arith.mulf %39, %16 : vector<64x256xf32>
    %41 = arith.addf %40, %17 : vector<64x256xf32>
    %c0_26 = arith.constant 0 : index
    %c0_27 = arith.constant 0 : index
    %42 = vector.load %arg8[%c0_26, %c0_27] : memref<32x64xf32, #tpu.memory_space<vmem>>, vector<32x64xf32>
    %cst_28 = arith.constant dense<0.000000e+00> : vector<32x256xf32>
    %43 = tpu.matmul %42, %41, %cst_28 {dimension_numbers = #tpu.dot_dimension_numbers<[1], [0], [0], [1], [0, 0, 1, 1], [], []>} : vector<32x64xf32>, vector<64x256xf32>, vector<32x256xf32> -> vector<32x256xf32>
    %c0_29 = arith.constant 0 : index
    %c0_30 = arith.constant 0 : index
    %44 = vector.load %arg9[%c0_29, %c0_30] : memref<32x1xf32, #tpu.memory_space<vmem>>, vector<32x1xf32>
    %45 = vector.broadcast %44 : vector<32x1xf32> to vector<32x256xf32>
    %46 = arith.addf %43, %45 : vector<32x256xf32>
    %47 = vector.extract_strided_slice %46 {offsets = [0, 0], sizes = [16, 256], strides = [1, 1]} : vector<32x256xf32> to vector<16x256xf32>
    %48 = vector.extract_strided_slice %46 {offsets = [16, 0], sizes = [16, 256], strides = [1, 1]} : vector<32x256xf32> to vector<16x256xf32>
    %49 = arith.mulf %47, %48 : vector<16x256xf32>
    %cst_31 = arith.constant dense<0.000000e+00> : vector<256xf32>
    %50 = vector.multi_reduction <add>, %49, %cst_31 [0] : vector<16x256xf32> to vector<256xf32>
    %51 = vector.shape_cast %50 : vector<256xf32> to vector<1x256xf32>
    %c0_32 = arith.constant 0 : index
    %c0_33 = arith.constant 0 : index
    %52 = vector.load %arg10[%c0_32, %c0_33] : memref<1x256xf32, #tpu.memory_space<vmem>>, vector<1x256xf32>
    tpu.vector_store %arg10[%c0_32, %c0_33], %51 {strides = array<i32>} : memref<1x256xf32, #tpu.memory_space<vmem>>, vector<1x256xf32>,
    return
  }
  func.func @transform_0(%arg0: i32) -> (i32, i32) {
    %c0_i32 = arith.constant 0 : i32
    %c0_i32_0 = arith.constant 0 : i32
    return %c0_i32, %arg0 : i32, i32
  }
  func.func @transform_1(%arg0: i32) -> (i32, i32) {
    %c0_i32 = arith.constant 0 : i32
    %c0_i32_0 = arith.constant 0 : i32
    return %c0_i32, %arg0 : i32, i32
  }
  func.func @transform_2(%arg0: i32) -> (i32, i32) {
    %c0_i32 = arith.constant 0 : i32
    %c0_i32_0 = arith.constant 0 : i32
    %c0_i32_1 = arith.constant 0 : i32
    return %c0_i32, %c0_i32_0 : i32, i32
  }
  func.func @transform_3(%arg0: i32) -> (i32, i32) {
    %c0_i32 = arith.constant 0 : i32
    %c0_i32_0 = arith.constant 0 : i32
    %c0_i32_1 = arith.constant 0 : i32
    return %c0_i32, %c0_i32_0 : i32, i32
  }
  func.func @transform_4(%arg0: i32) -> (i32, i32) {
    %c0_i32 = arith.constant 0 : i32
    %c0_i32_0 = arith.constant 0 : i32
    %c0_i32_1 = arith.constant 0 : i32
    return %c0_i32, %c0_i32_0 : i32, i32
  }
  func.func @transform_5(%arg0: i32) -> (i32, i32, i32) {
    %c0_i32 = arith.constant 0 : i32
    %c0_i32_0 = arith.constant 0 : i32
    %c0_i32_1 = arith.constant 0 : i32
    %c0_i32_2 = arith.constant 0 : i32
    return %c0_i32, %c0_i32_0, %c0_i32_1 : i32, i32, i32
  }
  func.func @transform_6(%arg0: i32) -> (i32, i32, i32) {
    %c0_i32 = arith.constant 0 : i32
    %c0_i32_0 = arith.constant 0 : i32
    %c0_i32_1 = arith.constant 0 : i32
    %c0_i32_2 = arith.constant 0 : i32
    return %c0_i32, %c0_i32_0, %c0_i32_1 : i32, i32, i32
  }
  func.func @transform_7(%arg0: i32) -> (i32, i32) {
    %c0_i32 = arith.constant 0 : i32
    %c0_i32_0 = arith.constant 0 : i32
    %c0_i32_1 = arith.constant 0 : i32
    return %c0_i32, %c0_i32_0 : i32, i32
  }
  func.func @transform_8(%arg0: i32) -> (i32, i32) {
    %c0_i32 = arith.constant 0 : i32
    %c0_i32_0 = arith.constant 0 : i32
    %c0_i32_1 = arith.constant 0 : i32
    return %c0_i32, %c0_i32_0 : i32, i32
  }
  func.func @transform_9(%arg0: i32) -> (i32, i32) {
    %c0_i32 = arith.constant 0 : i32
    %c0_i32_0 = arith.constant 0 : i32
    return %c0_i32, %arg0 : i32, i32
  }
}

</mosaic_0001>

<llo_original>
// kernel: tpu_custom_call.1
$region0: #{tpu_custom_call.1}
  #allocation0 [shape = 'u32[]', space=smem, size = 0x4, offset = 0x4, fixed_abs, tag = 'smem constant byte address 0x4 - core index']
  #allocation1 [shape = 'u32[144,128]{1,0:T(1,128)}', space=vmem, size = 0x12000, scoped, tag = 'internal scratch']
  %s0 = inlined_call_operand.vmem [shape: f32[16,512], index: 0, kind: input, shape index: {}]
  %s1 = inlined_call_operand.vmem [shape: f32[8,512], index: 1, kind: input, shape index: {}]
  %s2 = inlined_call_operand.vmem [shape: f32[128,16], index: 2, kind: input, shape index: {}]
  %s3 = inlined_call_operand.vmem [shape: f32[128,8], index: 3, kind: input, shape index: {}]
  %s4 = inlined_call_operand.vmem [shape: f32[128,1], index: 4, kind: input, shape index: {}]
  %s5 = inlined_call_operand.vmem [shape: f32[2,64,64], index: 5, kind: input, shape index: {}]
  %s6 = inlined_call_operand.vmem [shape: f32[2,64,1], index: 6, kind: input, shape index: {}]
  %s7 = inlined_call_operand.vmem [shape: f32[32,64], index: 7, kind: input, shape index: {}]
  %s8 = inlined_call_operand.vmem [shape: f32[32,1], index: 8, kind: input, shape index: {}]
  %s9 = inlined_call_operand.hbm [shape: f32[1,512], index: 9, kind: output, shape index: {}]
  %s10 = sld [smem:[#allocation0]]
  $region92: #{tpu_custom_call.1} parent=0
    _
  %s12 = ssub.s32 1, %s10
  %s13 = scalar_select 0, %s12, %s10
  $region1: #{tpu_custom_call.1} parent=0
    #allocation2 [shape = 'u8[32768]{0}', space=vmem, size = 0x8000, scoped, tag = 'input window, operand 0']
    #allocation3 [shape = 'u8[2048]{0}', space=vmem, size = 0x800, scoped, tag = 'output window, operand 0']
    #allocation4 [shape = 's32[2]{0}', space=sflag, size = 0x8, scoped, tag = 'scoped memory for tpu_custom_call.1']
    %14 = vsyncpa [#allocation4], 0
    %s15 = scalar_lea.sflag [#allocation4], 1
    %16 = vsyncpa %s15, 0
    loop: start=0, step=1, limit=4
    $region2: #{tpu_custom_call.1} parent=1 // loop_pre_header
      _
    $region3: #{tpu_custom_call.1} parent=1 // loop_header
      %s18 = sphi 0, %s22
      %p19 = scmp.ge.s32.totalorder %s18, 4
      %s28 = sphi 0, %s30
      %s31 = sphi 0, %s28
      %s32 = sphi 0, %s31
      %s48 = sphi 0, %s32
      %s54 = sphi 0, %s56
      %s57 = sphi 0, %s54
      %s58 = sphi 0, %s57
      %s74 = sphi 0, %s58
      %s78 = sphi 0, %s78
      %s80 = sphi 0, %s78
      %s81 = sphi 0, %s80
      %s95 = sphi 0, %s81
      %s99 = sphi 0, %s99
      %s101 = sphi 0, %s99
      %s102 = sphi 0, %s101
      %s116 = sphi 0, %s102
      %s120 = sphi 0, %s120
      %s122 = sphi 0, %s120
      %s123 = sphi 0, %s122
      %s137 = sphi 0, %s123
      %s141 = sphi 0, %s141
      %s143 = sphi 0, %s141
      %s144 = sphi 0, %s143
      %s158 = sphi 0, %s144
      %s162 = sphi 0, %s162
      %s164 = sphi 0, %s162
      %s165 = sphi 0, %s164
      %s179 = sphi 0, %s165
      %s183 = sphi 0, %s183
      %s185 = sphi 0, %s183
      %s186 = sphi 0, %s185
      %s200 = sphi 0, %s186
      %s204 = sphi 0, %s204
      %s206 = sphi 0, %s204
      %s207 = sphi 0, %s206
      %s221 = sphi 0, %s207
      %s227 = sphi 0, %s229
      %s230 = sphi 0, %s227
      %s231 = sphi 0, %s230
      %s247 = sphi 0, %s231
    $region4: #{tpu_custom_call.1} parent=1 // loop_header_branch
      %21 = sbr.rel (%p19) target = $region8
    $region5: #{tpu_custom_call.1} parent=1 // loop_body
      %s23 = ssub.s32 %s18, 1
      %s24 = ssub.s32 %s18, 2
      %s25 = sadd.s32 %s18, 1
      %s26 = ssub.s32 %s18, %s25
      %p27 = scmp.eq.s32.totalorder %s26, 0
      %s29 = sadd.s32 %s28, 1
      %s30 = scalar_select %p27, %s28, %s29
      %p33 = pneg %p27
      %p34 = scmp.eq.s32.totalorder %s18, 1
      %p35 = por %p33, %p34
      %p36 = scmp.ne.s32.totalorder %s28, %s31
      %p37 = scmp.eq.s32.totalorder %s18, 0
      %p38 = por %p36, %p37
      %p39 = scmp.ne.s32.totalorder %s28, %s31
      %p40 = scmp.eq.s32.totalorder %s23, 1
      %p41 = por %p39, %p40
      %p42 = scmp.ne.s32.totalorder %s31, %s32
      %p43 = scmp.eq.s32.totalorder %s23, 0
      %p44 = por %p42, %p43
      %p45 = scmp.ne.s32.totalorder %s31, %s32
      %p46 = scmp.eq.s32.totalorder %s24, 1
      %p47 = por %p45, %p46
      %p49 = scmp.ne.s32.totalorder %s32, %s48
      %p50 = scmp.eq.s32.totalorder %s24, 0
      %p51 = por %p49, %p50
      %s52 = ssub.s32 %s18, %s25
      %p53 = scmp.eq.s32.totalorder %s52, 0
      %s55 = sadd.s32 %s54, 1
      %s56 = scalar_select %p53, %s54, %s55
      %p59 = pneg %p53
      %p60 = scmp.eq.s32.totalorder %s18, 1
      %p61 = por %p59, %p60
      %p62 = scmp.ne.s32.totalorder %s54, %s57
      %p63 = scmp.eq.s32.totalorder %s18, 0
      %p64 = por %p62, %p63
      %p65 = scmp.ne.s32.totalorder %s54, %s57
      %p66 = scmp.eq.s32.totalorder %s23, 1
      %p67 = por %p65, %p66
      %p68 = scmp.ne.s32.totalorder %s57, %s58
      %p69 = scmp.eq.s32.totalorder %s23, 0
      %p70 = por %p68, %p69
      %p71 = scmp.ne.s32.totalorder %s57, %s58
      %p72 = scmp.eq.s32.totalorder %s24, 1
      %p73 = por %p71, %p72
      %p75 = scmp.ne.s32.totalorder %s58, %s74
      %p76 = scmp.eq.s32.totalorder %s24, 0
      %p77 = por %p75, %p76
      %s79 = sadd.s32 %s78, 1
      %p82 = scmp.eq.s32.totalorder %s18, 1
      %p83 = scmp.ne.s32.totalorder %s78, %s80
      %p84 = scmp.eq.s32.totalorder %s18, 0
      %p85 = por %p83, %p84
      %p86 = scmp.ne.s32.totalorder %s78, %s80
      %p87 = scmp.eq.s32.totalorder %s23, 1
      %p88 = por %p86, %p87
      %p89 = scmp.ne.s32.totalorder %s80, %s81
      %p90 = scmp.eq.s32.totalorder %s23, 0
      %p91 = por %p89, %p90
      %p92 = scmp.ne.s32.totalorder %s80, %s81
      %p93 = scmp.eq.s32.totalorder %s24, 1
      %p94 = por %p92, %p93
      %p96 = scmp.ne.s32.totalorder %s81, %s95
      %p97 = scmp.eq.s32.totalorder %s24, 0
      %p98 = por %p96, %p97
      %s100 = sadd.s32 %s99, 1
      %p103 = scmp.eq.s32.totalorder %s18, 1
      %p104 = scmp.ne.s32.totalorder %s99, %s101
      %p105 = scmp.eq.s32.totalorder %s18, 0
      %p106 = por %p104, %p105
      %p107 = scmp.ne.s32.totalorder %s99, %s101
      %p108 = scmp.eq.s32.totalorder %s23, 1
      %p109 = por %p107, %p108
      %p110 = scmp.ne.s32.totalorder %s101, %s102
      %p111 = scmp.eq.s32.totalorder %s23, 0
      %p112 = por %p110, %p111
      %p113 = scmp.ne.s32.totalorder %s101, %s102
      %p114 = scmp.eq.s32.totalorder %s24, 1
      %p115 = por %p113, %p114
      %p117 = scmp.ne.s32.totalorder %s102, %s116
      %p118 = scmp.eq.s32.totalorder %s24, 0
      %p119 = por %p117, %p118
      %s121 = sadd.s32 %s120, 1
      %p124 = scmp.eq.s32.totalorder %s18, 1
      %p125 = scmp.ne.s32.totalorder %s120, %s122
      %p126 = scmp.eq.s32.totalorder %s18, 0
      %p127 = por %p125, %p126
      %p128 = scmp.ne.s32.totalorder %s120, %s122
      %p129 = scmp.eq.s32.totalorder %s23, 1
      %p130 = por %p128, %p129
      %p131 = scmp.ne.s32.totalorder %s122, %s123
      %p132 = scmp.eq.s32.totalorder %s23, 0
      %p133 = por %p131, %p132
      %p134 = scmp.ne.s32.totalorder %s122, %s123
      %p135 = scmp.eq.s32.totalorder %s24, 1
      %p136 = por %p134, %p135
      %p138 = scmp.ne.s32.totalorder %s123, %s137
      %p139 = scmp.eq.s32.totalorder %s24, 0
      %p140 = por %p138, %p139
      %s142 = sadd.s32 %s141, 1
      %p145 = scmp.eq.s32.totalorder %s18, 1
      %p146 = scmp.ne.s32.totalorder %s141, %s143
      %p147 = scmp.eq.s32.totalorder %s18, 0
      %p148 = por %p146, %p147
      %p149 = scmp.ne.s32.totalorder %s141, %s143
      %p150 = scmp.eq.s32.totalorder %s23, 1
      %p151 = por %p149, %p150
      %p152 = scmp.ne.s32.totalorder %s143, %s144
      %p153 = scmp.eq.s32.totalorder %s23, 0
      %p154 = por %p152, %p153
      %p155 = scmp.ne.s32.totalorder %s143, %s144
      %p156 = scmp.eq.s32.totalorder %s24, 1
      %p157 = por %p155, %p156
      %p159 = scmp.ne.s32.totalorder %s144, %s158
      %p160 = scmp.eq.s32.totalorder %s24, 0
      %p161 = por %p159, %p160
      %s163 = sadd.s32 %s162, 1
      %p166 = scmp.eq.s32.totalorder %s18, 1
      %p167 = scmp.ne.s32.totalorder %s162, %s164
      %p168 = scmp.eq.s32.totalorder %s18, 0
      %p169 = por %p167, %p168
      %p170 = scmp.ne.s32.totalorder %s162, %s164
      %p171 = scmp.eq.s32.totalorder %s23, 1
      %p172 = por %p170, %p171
      %p173 = scmp.ne.s32.totalorder %s164, %s165
      %p174 = scmp.eq.s32.totalorder %s23, 0
      %p175 = por %p173, %p174
      %p176 = scmp.ne.s32.totalorder %s164, %s165
      %p177 = scmp.eq.s32.totalorder %s24, 1
      %p178 = por %p176, %p177
      %p180 = scmp.ne.s32.totalorder %s165, %s179
      %p181 = scmp.eq.s32.totalorder %s24, 0
      %p182 = por %p180, %p181
      %s184 = sadd.s32 %s183, 1
      %p187 = scmp.eq.s32.totalorder %s18, 1
      %p188 = scmp.ne.s32.totalorder %s183, %s185
      %p189 = scmp.eq.s32.totalorder %s18, 0
      %p190 = por %p188, %p189
      %p191 = scmp.ne.s32.totalorder %s183, %s185
      %p192 = scmp.eq.s32.totalorder %s23, 1
      %p193 = por %p191, %p192
      %p194 = scmp.ne.s32.totalorder %s185, %s186
      %p195 = scmp.eq.s32.totalorder %s23, 0
      %p196 = por %p194, %p195
      %p197 = scmp.ne.s32.totalorder %s185, %s186
      %p198 = scmp.eq.s32.totalorder %s24, 1
      %p199 = por %p197, %p198
      %p201 = scmp.ne.s32.totalorder %s186, %s200
      %p202 = scmp.eq.s32.totalorder %s24, 0
      %p203 = por %p201, %p202
      %s205 = sadd.s32 %s204, 1
      %p208 = scmp.eq.s32.totalorder %s18, 1
      %p209 = scmp.ne.s32.totalorder %s204, %s206
      %p210 = scmp.eq.s32.totalorder %s18, 0
      %p211 = por %p209, %p210
      %p212 = scmp.ne.s32.totalorder %s204, %s206
      %p213 = scmp.eq.s32.totalorder %s23, 1
      %p214 = por %p212, %p213
      %p215 = scmp.ne.s32.totalorder %s206, %s207
      %p216 = scmp.eq.s32.totalorder %s23, 0
      %p217 = por %p215, %p216
      %p218 = scmp.ne.s32.totalorder %s206, %s207
      %p219 = scmp.eq.s32.totalorder %s24, 1
      %p220 = por %p218, %p219
      %p222 = scmp.ne.s32.totalorder %s207, %s221
      %p223 = scmp.eq.s32.totalorder %s24, 0
      %p224 = por %p222, %p223
      %s225 = ssub.s32 %s18, %s25
      %p226 = scmp.eq.s32.totalorder %s225, 0
      %s228 = sadd.s32 %s227, 1
      %s229 = scalar_select %p226, %s227, %s228
      %p232 = pneg %p226
      %p233 = scmp.eq.s32.totalorder %s18, 1
      %p234 = por %p232, %p233
      %p235 = scmp.ne.s32.totalorder %s227, %s230
      %p236 = scmp.eq.s32.totalorder %s18, 0
      %p237 = por %p235, %p236
      %p238 = scmp.ne.s32.totalorder %s227, %s230
      %p239 = scmp.eq.s32.totalorder %s23, 1
      %p240 = por %p238, %p239
      %p241 = scmp.ne.s32.totalorder %s230, %s231
      %p242 = scmp.eq.s32.totalorder %s23, 0
      %p243 = por %p241, %p242
      %p244 = scmp.ne.s32.totalorder %s230, %s231
      %p245 = scmp.eq.s32.totalorder %s24, 1
      %p246 = por %p244, %p245
      %p248 = scmp.ne.s32.totalorder %s231, %s247
      %p249 = scmp.eq.s32.totalorder %s24, 0
      %p250 = por %p248, %p249
      %p251 = scmp.le.s32.totalorder 1, %s18
      %p252 = scmp.lt.s32.totalorder %s18, 3
      %p253 = pnand %p251, %p252
      %p254 = pneg %p253
      // Predicated region
      $region9: #{tpu_custom_call.1} parent=5 // pred_check
        _
      $region10: #{tpu_custom_call.1} parent=5 // pred_check_branch
        %256 = sbr.rel (%p253) target = $region12
      $region11: #{tpu_custom_call.1} parent=5 // pred_region
        %s257 = ssub.s32 %s18, 1
        // Predicated region
        $region13: #{tpu_custom_call.1} parent=11 // pred_check
          %p258 = pneg %p91
        $region14: #{tpu_custom_call.1} parent=11 // pred_check_branch
          %260 = sbr.rel (%p258) target = $region16
        $region15: #{tpu_custom_call.1} parent=11 // pred_region
          _
        $region16: #{tpu_custom_call.1} parent=11 // pred_fallthru
          _
        // Predicated region
        $region17: #{tpu_custom_call.1} parent=11 // pred_check
          %p261 = pneg %p112
        $region18: #{tpu_custom_call.1} parent=11 // pred_check_branch
          %263 = sbr.rel (%p261) target = $region20
        $region19: #{tpu_custom_call.1} parent=11 // pred_region
          _
        $region20: #{tpu_custom_call.1} parent=11 // pred_fallthru
          _
        // Predicated region
        $region21: #{tpu_custom_call.1} parent=11 // pred_check
          %p264 = pneg %p133
        $region22: #{tpu_custom_call.1} parent=11 // pred_check_branch
          %266 = sbr.rel (%p264) target = $region24
        $region23: #{tpu_custom_call.1} parent=11 // pred_region
          _
        $region24: #{tpu_custom_call.1} parent=11 // pred_fallthru
          _
        // Predicated region
        $region25: #{tpu_custom_call.1} parent=11 // pred_check
          %p267 = pneg %p154
        $region26: #{tpu_custom_call.1} parent=11 // pred_check_branch
          %269 = sbr.rel (%p267) target = $region28
        $region27: #{tpu_custom_call.1} parent=11 // pred_region
          _
        $region28: #{tpu_custom_call.1} parent=11 // pred_fallthru
          _
        // Predicated region
        $region29: #{tpu_custom_call.1} parent=11 // pred_check
          %p270 = pneg %p175
        $region30: #{tpu_custom_call.1} parent=11 // pred_check_branch
          %272 = sbr.rel (%p270) target = $region32
        $region31: #{tpu_custom_call.1} parent=11 // pred_region
          _
        $region32: #{tpu_custom_call.1} parent=11 // pred_fallthru
          _
        // Predicated region
        $region33: #{tpu_custom_call.1} parent=11 // pred_check
          %p273 = pneg %p196
        $region34: #{tpu_custom_call.1} parent=11 // pred_check_branch
          %275 = sbr.rel (%p273) target = $region36
        $region35: #{tpu_custom_call.1} parent=11 // pred_region
          _
        $region36: #{tpu_custom_call.1} parent=11 // pred_fallthru
          _
        // Predicated region
        $region37: #{tpu_custom_call.1} parent=11 // pred_check
          %p276 = pneg %p217
        $region38: #{tpu_custom_call.1} parent=11 // pred_check_branch
          %278 = sbr.rel (%p276) target = $region40
        $region39: #{tpu_custom_call.1} parent=11 // pred_region
          _
        $region40: #{tpu_custom_call.1} parent=11 // pred_fallthru
          _
      $region12: #{tpu_custom_call.1} parent=5 // pred_fallthru
        _
      %p279 = scmp.lt.s32.totalorder %s18, 2
      // Predicated region
      $region41: #{tpu_custom_call.1} parent=5 // pred_check
        %p280 = pneg %p279
      $region42: #{tpu_custom_call.1} parent=5 // pred_check_branch
        %282 = sbr.rel (%p280) target = $region44
      $region43: #{tpu_custom_call.1} parent=5 // pred_region
        // Predicated region
        $region45: #{tpu_custom_call.1} parent=43 // pred_check
          %p283 = pneg %p38
        $region46: #{tpu_custom_call.1} parent=43 // pred_check_branch
          %285 = sbr.rel (%p283) target = $region48
        $region47: #{tpu_custom_call.1} parent=43 // pred_region
          %s286 = sand.u32 %s28, 1
          %s287 = sand.u32 %s28, 1
          %s288 = smul.addr %s287, 32
          %s289 = scalar_lea.vmem [#allocation2], %s288
          %s290 = smul.u32 2, %s18
          %s291 = smul.addr %s290, 8
          %s292 = scalar_lea.vmem %s0, %s291
          // Predicated region
          $region49: #{tpu_custom_call.1} parent=47 // pred_check
            _
          $region50: #{tpu_custom_call.1} parent=47 // pred_check_branch
            %294 = sbr.rel (0) target = $region52
          $region51: #{tpu_custom_call.1} parent=47 // pred_region
            // Predicated region
            $region53: #{tpu_custom_call.1} parent=51 // pred_check
              _
            $region54: #{tpu_custom_call.1} parent=51 // pred_check_branch
              %296 = sbr.rel (0) target = $region56
            $region55: #{tpu_custom_call.1} parent=51 // pred_region
              loop: start=0, step=1, limit=1
              $region57: #{tpu_custom_call.1} parent=55 // loop_pre_header
                _
              $region58: #{tpu_custom_call.1} parent=55 // loop_header
                %s298 = sphi 0, %s302
                %p299 = scmp.ge.s32.totalorder %s298, 1
                %s303 = sphi %s292, %s292
                %s304 = sphi %s289, %s289
              $region59: #{tpu_custom_call.1} parent=55 // loop_header_branch
                %301 = sbr.rel (%p299) target = $region63
              $region60: #{tpu_custom_call.1} parent=55 // loop_body
                %v305 = vld [vmem:[%s303] sm:$0xff]
                %306 = vst [vmem:[%s304] sm:$0xff] %v305
                %v307 = vld [vmem:[%s303 + $0x8] sm:$0xff]
                %308 = vst [vmem:[%s304 + $0x8] sm:$0xff] %v307
                %v309 = vld [vmem:[%s303 + $0x20] sm:$0xff]
                %310 = vst [vmem:[%s304 + $0x10] sm:$0xff] %v309
                %v311 = vld [vmem:[%s303 + $0x28] sm:$0xff]
                %312 = vst [vmem:[%s304 + $0x18] sm:$0xff] %v311
              $region61: #{tpu_custom_call.1} parent=55 // loop_footer
                %s302 = sadd.s32 1, %s298
              $region62: #{tpu_custom_call.1} parent=55 // loop_footer_branch
                %297 = sbr.rel target = $region58
              $region63: #{tpu_custom_call.1} parent=55 // loop_exit
                _
            $region56: #{tpu_custom_call.1} parent=51 // pred_fallthru
              _
            // Predicated region
            $region64: #{tpu_custom_call.1} parent=51 // pred_check
              _
            $region65: #{tpu_custom_call.1} parent=51 // pred_check_branch
              %314 = sbr.rel target = $region67
            $region66: #{tpu_custom_call.1} parent=51 // pred_region
              _
            $region67: #{tpu_custom_call.1} parent=51 // pred_fallthru
              _
          $region52: #{tpu_custom_call.1} parent=47 // pred_fallthru
            _
          %315 = vnop
        $region48: #{tpu_custom_call.1} parent=43 // pred_fallthru
          _
        // Predicated region
        $region68: #{tpu_custom_call.1} parent=43 // pred_check
          %p316 = pneg %p64
        $region69: #{tpu_custom_call.1} parent=43 // pred_check_branch
          %318 = sbr.rel (%p316) target = $region71
        $region70: #{tpu_custom_call.1} parent=43 // pred_region
          %s319 = smul.u32 2, %s18
          %p320 = scmp.lt.s32.totalorder %s319, 3
          %s321 = scalar_select %p320, %s319, 3
          %s322 = smul.addr %s321, 8
          %s323 = scalar_lea.vmem %s1, %s322
          %s324 = smul.u32 2, %s18
        $region71: #{tpu_custom_call.1} parent=43 // pred_fallthru
          _
      $region44: #{tpu_custom_call.1} parent=5 // pred_fallthru
        _
      %p325 = scmp.le.s32.totalorder 1, %s18
      %p326 = scmp.lt.s32.totalorder %s18, 3
      %p327 = pnand %p325, %p326
      %p328 = pneg %p327
      // Predicated region
      $region72: #{tpu_custom_call.1} parent=5 // pred_check
        _
      $region73: #{tpu_custom_call.1} parent=5 // pred_check_branch
        %330 = sbr.rel (%p327) target = $region75
      $region74: #{tpu_custom_call.1} parent=5 // pred_region
        %s331 = ssub.s32 %s18, 1
        %s332 = sand.u32 %s31, 1
        %s333 = sand.u32 %s31, 1
        %s334 = smul.addr %s333, 32
        %s335 = scalar_lea.vmem [#allocation2], %s334
        // Predicated region
        $region76: #{tpu_custom_call.1} parent=74 // pred_check
          %p336 = pneg %p44
        $region77: #{tpu_custom_call.1} parent=74 // pred_check_branch
          %338 = sbr.rel (%p336) target = $region79
        $region78: #{tpu_custom_call.1} parent=74 // pred_region
          _
        $region79: #{tpu_custom_call.1} parent=74 // pred_fallthru
          _
        %s339 = sand.u32 %s31, 1
        %s340 = sand.u32 %s31, 1
        %s341 = smul.addr %s340, 32
        %s342 = scalar_lea.vmem [#allocation2], %s341
        %p343 = pneg %p44
        %p344 = pneg %p41
        %s345 = smul.u32 2, %s23
        %p346 = scmp.lt.s32.totalorder %s345, 3
        %s347 = scalar_select %p346, %s345, 3
        %s348 = smul.addr %s347, 8
        %s349 = scalar_lea.vmem %s1, %s348
        %p350 = pneg %p70
        %p351 = pneg %p67
        %p352 = pneg %p91
        %p353 = pneg %p88
        %p354 = pneg %p112
        %p355 = pneg %p109
        %p356 = pneg %p133
        %p357 = pneg %p130
        %p358 = pneg %p154
        %p359 = pneg %p151
        %p360 = pneg %p175
        %p361 = pneg %p172
        %p362 = pneg %p196
        %p363 = pneg %p193
        %p364 = pneg %p217
        %p365 = pneg %p214
        %p366 = pneg %p243
        %p367 = pneg %p240
        %s368 = sand.u32 %s230, 1
        %s369 = scalar_lea.sflag [#allocation4], %s368
        %s370 = sand.u32 %s230, 1
        %s371 = smul.addr %s370, 2
        %s372 = scalar_lea.vmem [#allocation3], %s371
        %s373 = smul.u32 2, %s23
        %s374 = smul.u32 2, %s23
        %p375 = scmp.lt.s32.totalorder %s374, 3
        %s376 = scalar_select %p375, %s374, 3
        %s377 = smul.addr %s376, 8
        %s378 = scalar_lea.vmem %s1, %s377
        %s379 = smul.u32 2, %s23
        %s380 = smul.u32 2, %s23
        %v381 = vld [vmem:[%s2] sm:$0xff]
        %v382 = vld [vmem:[%s2 + $0x8] sm:$0xff]
        %v383 = vld [vmem:[%s2 + $0x10] sm:$0xff]
        %v384 = vld [vmem:[%s2 + $0x18] sm:$0xff]
        %v385 = vld [vmem:[%s2 + $0x20] sm:$0xff]
        %v386 = vld [vmem:[%s2 + $0x28] sm:$0xff]
        %v387 = vld [vmem:[%s2 + $0x30] sm:$0xff]
        %v388 = vld [vmem:[%s2 + $0x38] sm:$0xff]
        %v389 = vld [vmem:[%s2 + $0x40] sm:$0xff]
        %v390 = vld [vmem:[%s2 + $0x48] sm:$0xff]
        %v391 = vld [vmem:[%s2 + $0x50] sm:$0xff]
        %v392 = vld [vmem:[%s2 + $0x58] sm:$0xff]
        %v393 = vld [vmem:[%s2 + $0x60] sm:$0xff]
        %v394 = vld [vmem:[%s2 + $0x68] sm:$0xff]
        %v395 = vld [vmem:[%s2 + $0x70] sm:$0xff]
        %v396 = vld [vmem:[%s2 + $0x78] sm:$0xff]
        %v397 = vld [vmem:[%s335] sm:$0xff]
        %v398 = vld [vmem:[%s335 + $0x8] sm:$0xff]
        %v399 = vld [vmem:[%s335 + $0x10] sm:$0xff]
        %v400 = vld [vmem:[%s335 + $0x18] sm:$0xff]
        %v401 = vld [vmem:[%s3] sm:$0xff]
        %v402 = vld [vmem:[%s3 + $0x8] sm:$0xff]
        %v403 = vld [vmem:[%s3 + $0x10] sm:$0xff]
        %v404 = vld [vmem:[%s3 + $0x18] sm:$0xff]
        %v405 = vld [vmem:[%s3 + $0x20] sm:$0xff]
        %v406 = vld [vmem:[%s3 + $0x28] sm:$0xff]
        %v407 = vld [vmem:[%s3 + $0x30] sm:$0xff]
        %v408 = vld [vmem:[%s3 + $0x38] sm:$0xff]
        %v409 = vld [vmem:[%s3 + $0x40] sm:$0xff]
        %v410 = vld [vmem:[%s3 + $0x48] sm:$0xff]
        %v411 = vld [vmem:[%s3 + $0x50] sm:$0xff]
        %v412 = vld [vmem:[%s3 + $0x58] sm:$0xff]
        %v413 = vld [vmem:[%s3 + $0x60] sm:$0xff]
        %v414 = vld [vmem:[%s3 + $0x68] sm:$0xff]
        %v415 = vld [vmem:[%s3 + $0x70] sm:$0xff]
        %v416 = vld [vmem:[%s3 + $0x78] sm:$0xff]
        %v417 = vld [vmem:[%s378] sm:$0xff]
        %v418 = vld [vmem:[%s378 + $0x8] sm:$0xff]
        %vm419 = vcmask 64512
        %v421 = vsel %vm419, %v401, 0
        %v424 = vsel %vm419, %v402, 0
        %v427 = vsel %vm419, %v403, 0
        %v430 = vsel %vm419, %v404, 0
        %v433 = vsel %vm419, %v405, 0
        %v436 = vsel %vm419, %v406, 0
        %v439 = vsel %vm419, %v407, 0
        %v442 = vsel %vm419, %v408, 0
        %v445 = vsel %vm419, %v409, 0
        %v448 = vsel %vm419, %v410, 0
        %v451 = vsel %vm419, %v411, 0
        %v454 = vsel %vm419, %v412, 0
        %v457 = vsel %vm419, %v413, 0
        %v460 = vsel %vm419, %v414, 0
        %v463 = vsel %vm419, %v415, 0
        %v466 = vsel %vm419, %v416, 0
        %468 = vmatprep.subr.mxu0 0.0
        %469 = vmatpush1.msra.mxu0 0.0
        %470 = vmatprep.subr.mxu0 0.0
        %471 = vmatpush1.msra.mxu0 0.0
        %472 = vmatprep.subr.mxu0 0.0
        %473 = vmatpush1.msra.mxu0 0.0
        %474 = vmatprep.subr.mxu0 0.0
        %475 = vmatpush1.msra.mxu0 0.0
        %476 = vmatprep.subr.mxu0 0.0
        %477 = vmatpush1.msra.mxu0 0.0
        %478 = vmatprep.subr.mxu0 0.0
        %479 = vmatpush1.msra.mxu0 0.0
        %480 = vmatprep.subr.mxu0 0.0
        %481 = vmatpush1.msra.mxu0 0.0
        %482 = vmatprep.subr.mxu0 0.0
        %483 = vmatpush1.msra.mxu0 0.0
        %484 = vmatprep.subr.mxu0 0.0
        %485 = vmatpush1.msra.mxu0 0.0
        %486 = vmatprep.subr.mxu0 0.0
        %487 = vmatpush1.msra.mxu0 0.0
        %488 = vmatprep.subr.mxu0 0.0
        %489 = vmatpush1.msra.mxu0 0.0
        %490 = vmatprep.subr.mxu0 0.0
        %491 = vmatpush1.msra.mxu0 0.0
        %492 = vmatprep.subr.mxu0 0.0
        %493 = vmatpush1.msra.mxu0 0.0
        %494 = vmatprep.subr.mxu0 0.0
        %495 = vmatpush1.msra.mxu0 0.0
        %496 = vmatprep.subr.mxu0 0.0
        %497 = vmatpush1.msra.mxu0 0.0
        %498 = vmatprep.subr.mxu0 %v418
        %499 = vmatpush1.msra.mxu0 %v417
        %500 = vmatprep.subr.mxu0 0.0
        %501 = vmatpush2.msra.mxu0 0.0
        %502 = vmatprep.subr.mxu0 0.0
        %503 = vmatpush2.msra.mxu0 0.0
        %504 = vmatprep.subr.mxu0 0.0
        %505 = vmatpush2.msra.mxu0 0.0
        %506 = vmatprep.subr.mxu0 0.0
        %507 = vmatpush2.msra.mxu0 0.0
        %508 = vmatprep.subr.mxu0 0.0
        %509 = vmatpush2.msra.mxu0 0.0
        %510 = vmatprep.subr.mxu0 0.0
        %511 = vmatpush2.msra.mxu0 0.0
        %512 = vmatprep.subr.mxu0 0.0
        %513 = vmatpush2.msra.mxu0 0.0
        %514 = vmatprep.subr.mxu0 0.0
        %515 = vmatpush2.msra.mxu0 0.0
        %516 = vmatprep.subr.mxu0 0.0
        %517 = vmatpush2.msra.mxu0 0.0
        %518 = vmatprep.subr.mxu0 0.0
        %519 = vmatpush2.msra.mxu0 0.0
        %520 = vmatprep.subr.mxu0 0.0
        %521 = vmatpush2.msra.mxu0 0.0
        %522 = vmatprep.subr.mxu0 0.0
        %523 = vmatpush2.msra.mxu0 0.0
        %524 = vmatprep.subr.mxu0 0.0
        %525 = vmatpush2.msra.mxu0 0.0
        %526 = vmatprep.subr.mxu0 0.0
        %527 = vmatpush2.msra.mxu0 0.0
        %528 = vmatprep.subr.mxu0 0.0
        %529 = vmatpush2.msra.mxu0 0.0
        %530 = vmatprep.subr.mxu0 0.0
        %531 = vmatpush2.msra.mxu0 0.0
        %532 = vmatprep.mubr.f32.mxu0 0.0
        %533 = vmatmul.mubr.f32.gmra.mxu0 %v421
        %v534 = vpop.f32.mrf.mxu0
        %v535 = vadd.f32 0.0, %v534
        %v536 = vpop.f32.mrf.mxu0
        %v537 = vadd.f32 0.0, %v536
        %538 = vmatprep.mubr.f32.mxu0 0.0
        %539 = vmatmul.mubr.f32.gmra.mxu0 %v424
        %v540 = vpop.f32.mrf.mxu0
        %v541 = vadd.f32 0.0, %v540
        %v542 = vpop.f32.mrf.mxu0
        %v543 = vadd.f32 0.0, %v542
        %544 = vmatprep.mubr.f32.mxu0 0.0
        %545 = vmatmul.mubr.f32.gmra.mxu0 %v427
        %v546 = vpop.f32.mrf.mxu0
        %v547 = vadd.f32 0.0, %v546
        %v548 = vpop.f32.mrf.mxu0
        %v549 = vadd.f32 0.0, %v548
        %550 = vmatprep.mubr.f32.mxu0 0.0
        %551 = vmatmul.mubr.f32.gmra.mxu0 %v430
        %v552 = vpop.f32.mrf.mxu0
        %v553 = vadd.f32 0.0, %v552
        %v554 = vpop.f32.mrf.mxu0
        %v555 = vadd.f32 0.0, %v554
        %556 = vmatprep.mubr.f32.mxu0 0.0
        %557 = vmatmul.mubr.f32.gmra.mxu0 %v433
        %v558 = vpop.f32.mrf.mxu0
        %v559 = vadd.f32 0.0, %v558
        %v560 = vpop.f32.mrf.mxu0
        %v561 = vadd.f32 0.0, %v560
        %562 = vmatprep.mubr.f32.mxu0 0.0
        %563 = vmatmul.mubr.f32.gmra.mxu0 %v436
        %v564 = vpop.f32.mrf.mxu0
        %v565 = vadd.f32 0.0, %v564
        %v566 = vpop.f32.mrf.mxu0
        %v567 = vadd.f32 0.0, %v566
        %568 = vmatprep.mubr.f32.mxu0 0.0
        %569 = vmatmul.mubr.f32.gmra.mxu0 %v439
        %v570 = vpop.f32.mrf.mxu0
        %v571 = vadd.f32 0.0, %v570
        %v572 = vpop.f32.mrf.mxu0
        %v573 = vadd.f32 0.0, %v572
        %574 = vmatprep.mubr.f32.mxu0 0.0
        %575 = vmatmul.mubr.f32.gmra.mxu0 %v442
        %v576 = vpop.f32.mrf.mxu0
        %v577 = vadd.f32 0.0, %v576
        %v578 = vpop.f32.mrf.mxu0
        %v579 = vadd.f32 0.0, %v578
        %580 = vmatprep.mubr.f32.mxu0 0.0
        %581 = vmatmul.mubr.f32.gmra.mxu0 %v445
        %v582 = vpop.f32.mrf.mxu0
        %v583 = vadd.f32 0.0, %v582
        %v584 = vpop.f32.mrf.mxu0
        %v585 = vadd.f32 0.0, %v584
        %586 = vmatprep.mubr.f32.mxu0 0.0
        %587 = vmatmul.mubr.f32.gmra.mxu0 %v448
        %v588 = vpop.f32.mrf.mxu0
        %v589 = vadd.f32 0.0, %v588
        %v590 = vpop.f32.mrf.mxu0
        %v591 = vadd.f32 0.0, %v590
        %592 = vmatprep.mubr.f32.mxu0 0.0
        %593 = vmatmul.mubr.f32.gmra.mxu0 %v451
        %v594 = vpop.f32.mrf.mxu0
        %v595 = vadd.f32 0.0, %v594
        %v596 = vpop.f32.mrf.mxu0
        %v597 = vadd.f32 0.0, %v596
        %598 = vmatprep.mubr.f32.mxu0 0.0
        %599 = vmatmul.mubr.f32.gmra.mxu0 %v454
        %v600 = vpop.f32.mrf.mxu0
        %v601 = vadd.f32 0.0, %v600
        %v602 = vpop.f32.mrf.mxu0
        %v603 = vadd.f32 0.0, %v602
        %604 = vmatprep.mubr.f32.mxu0 0.0
        %605 = vmatmul.mubr.f32.gmra.mxu0 %v457
        %v606 = vpop.f32.mrf.mxu0
        %v607 = vadd.f32 0.0, %v606
        %v608 = vpop.f32.mrf.mxu0
        %v609 = vadd.f32 0.0, %v608
        %610 = vmatprep.mubr.f32.mxu0 0.0
        %611 = vmatmul.mubr.f32.gmra.mxu0 %v460
        %v612 = vpop.f32.mrf.mxu0
        %v613 = vadd.f32 0.0, %v612
        %v614 = vpop.f32.mrf.mxu0
        %v615 = vadd.f32 0.0, %v614
        %616 = vmatprep.mubr.f32.mxu0 0.0
        %617 = vmatmul.mubr.f32.gmra.mxu0 %v463
        %v618 = vpop.f32.mrf.mxu0
        %v619 = vadd.f32 0.0, %v618
        %v620 = vpop.f32.mrf.mxu0
        %v621 = vadd.f32 0.0, %v620
        %622 = vmatprep.mubr.f32.mxu0 0.0
        %623 = vmatmul.mubr.f32.gmra.mxu0 %v466
        %v624 = vpop.f32.mrf.mxu0
        %v625 = vadd.f32 0.0, %v624
        %v626 = vpop.f32.mrf.mxu0
        %v627 = vadd.f32 0.0, %v626
        %628 = vdwg.mxu0
        %vm629 = vcmask 130048
        %v631 = vsel %vm629, %v381, 0
        %v634 = vsel %vm629, %v382, 0
        %v637 = vsel %vm629, %v383, 0
        %v640 = vsel %vm629, %v384, 0
        %v643 = vsel %vm629, %v385, 0
        %v646 = vsel %vm629, %v386, 0
        %v649 = vsel %vm629, %v387, 0
        %v652 = vsel %vm629, %v388, 0
        %v655 = vsel %vm629, %v389, 0
        %v658 = vsel %vm629, %v390, 0
        %v661 = vsel %vm629, %v391, 0
        %v664 = vsel %vm629, %v392, 0
        %v667 = vsel %vm629, %v393, 0
        %v670 = vsel %vm629, %v394, 0
        %v673 = vsel %vm629, %v395, 0
        %v676 = vsel %vm629, %v396, 0
        %678 = vmatprep.subr.mxu0 0.0
        %679 = vmatpush1.msra.mxu0 0.0
        %680 = vmatprep.subr.mxu0 0.0
        %681 = vmatpush1.msra.mxu0 0.0
        %682 = vmatprep.subr.mxu0 0.0
        %683 = vmatpush1.msra.mxu0 0.0
        %684 = vmatprep.subr.mxu0 0.0
        %685 = vmatpush1.msra.mxu0 0.0
        %686 = vmatprep.subr.mxu0 0.0
        %687 = vmatpush1.msra.mxu0 0.0
        %688 = vmatprep.subr.mxu0 0.0
        %689 = vmatpush1.msra.mxu0 0.0
        %690 = vmatprep.subr.mxu0 0.0
        %691 = vmatpush1.msra.mxu0 0.0
        %692 = vmatprep.subr.mxu0 0.0
        %693 = vmatpush1.msra.mxu0 0.0
        %694 = vmatprep.subr.mxu0 0.0
        %695 = vmatpush1.msra.mxu0 0.0
        %696 = vmatprep.subr.mxu0 0.0
        %697 = vmatpush1.msra.mxu0 0.0
        %698 = vmatprep.subr.mxu0 0.0
        %699 = vmatpush1.msra.mxu0 0.0
        %700 = vmatprep.subr.mxu0 0.0
        %701 = vmatpush1.msra.mxu0 0.0
        %702 = vmatprep.subr.mxu0 0.0
        %703 = vmatpush1.msra.mxu0 0.0
        %704 = vmatprep.subr.mxu0 0.0
        %705 = vmatpush1.msra.mxu0 0.0
        %706 = vmatprep.subr.mxu0 %v400
        %707 = vmatpush1.msra.mxu0 %v399
        %708 = vmatprep.subr.mxu0 %v398
        %709 = vmatpush1.msra.mxu0 %v397
        %710 = vmatprep.subr.mxu0 0.0
        %711 = vmatpush2.msra.mxu0 0.0
        %712 = vmatprep.subr.mxu0 0.0
        %713 = vmatpush2.msra.mxu0 0.0
        %714 = vmatprep.subr.mxu0 0.0
        %715 = vmatpush2.msra.mxu0 0.0
        %716 = vmatprep.subr.mxu0 0.0
        %717 = vmatpush2.msra.mxu0 0.0
        %718 = vmatprep.subr.mxu0 0.0
        %719 = vmatpush2.msra.mxu0 0.0
        %720 = vmatprep.subr.mxu0 0.0
        %721 = vmatpush2.msra.mxu0 0.0
        %722 = vmatprep.subr.mxu0 0.0
        %723 = vmatpush2.msra.mxu0 0.0
        %724 = vmatprep.subr.mxu0 0.0
        %725 = vmatpush2.msra.mxu0 0.0
        %726 = vmatprep.subr.mxu0 0.0
        %727 = vmatpush2.msra.mxu0 0.0
        %728 = vmatprep.subr.mxu0 0.0
        %729 = vmatpush2.msra.mxu0 0.0
        %730 = vmatprep.subr.mxu0 0.0
        %731 = vmatpush2.msra.mxu0 0.0
        %732 = vmatprep.subr.mxu0 0.0
        %733 = vmatpush2.msra.mxu0 0.0
        %734 = vmatprep.subr.mxu0 0.0
        %735 = vmatpush2.msra.mxu0 0.0
        %736 = vmatprep.subr.mxu0 0.0
        %737 = vmatpush2.msra.mxu0 0.0
        %738 = vmatprep.subr.mxu0 0.0
        %739 = vmatpush2.msra.mxu0 0.0
        %740 = vmatprep.subr.mxu0 0.0
        %741 = vmatpush2.msra.mxu0 0.0
        %742 = vmatprep.mubr.f32.mxu0 0.0
        %743 = vmatmul.mubr.f32.gmra.mxu0 %v631
        %v744 = vpop.f32.mrf.mxu0
        %v745 = vadd.f32 %v535, %v744
        %v746 = vpop.f32.mrf.mxu0
        %v747 = vadd.f32 %v537, %v746
        %748 = vmatprep.mubr.f32.mxu0 0.0
        %749 = vmatmul.mubr.f32.gmra.mxu0 %v634
        %v750 = vpop.f32.mrf.mxu0
        %v751 = vadd.f32 %v541, %v750
        %v752 = vpop.f32.mrf.mxu0
        %v753 = vadd.f32 %v543, %v752
        %754 = vmatprep.mubr.f32.mxu0 0.0
        %755 = vmatmul.mubr.f32.gmra.mxu0 %v637
        %v756 = vpop.f32.mrf.mxu0
        %v757 = vadd.f32 %v547, %v756
        %v758 = vpop.f32.mrf.mxu0
        %v759 = vadd.f32 %v549, %v758
        %760 = vmatprep.mubr.f32.mxu0 0.0
        %761 = vmatmul.mubr.f32.gmra.mxu0 %v640
        %v762 = vpop.f32.mrf.mxu0
        %v763 = vadd.f32 %v553, %v762
        %v764 = vpop.f32.mrf.mxu0
        %v765 = vadd.f32 %v555, %v764
        %766 = vmatprep.mubr.f32.mxu0 0.0
        %767 = vmatmul.mubr.f32.gmra.mxu0 %v643
        %v768 = vpop.f32.mrf.mxu0
        %v769 = vadd.f32 %v559, %v768
        %v770 = vpop.f32.mrf.mxu0
        %v771 = vadd.f32 %v561, %v770
        %772 = vmatprep.mubr.f32.mxu0 0.0
        %773 = vmatmul.mubr.f32.gmra.mxu0 %v646
        %v774 = vpop.f32.mrf.mxu0
        %v775 = vadd.f32 %v565, %v774
        %v776 = vpop.f32.mrf.mxu0
        %v777 = vadd.f32 %v567, %v776
        %778 = vmatprep.mubr.f32.mxu0 0.0
        %779 = vmatmul.mubr.f32.gmra.mxu0 %v649
        %v780 = vpop.f32.mrf.mxu0
        %v781 = vadd.f32 %v571, %v780
        %v782 = vpop.f32.mrf.mxu0
        %v783 = vadd.f32 %v573, %v782
        %784 = vmatprep.mubr.f32.mxu0 0.0
        %785 = vmatmul.mubr.f32.gmra.mxu0 %v652
        %v786 = vpop.f32.mrf.mxu0
        %v787 = vadd.f32 %v577, %v786
        %v788 = vpop.f32.mrf.mxu0
        %v789 = vadd.f32 %v579, %v788
        %790 = vmatprep.mubr.f32.mxu0 0.0
        %791 = vmatmul.mubr.f32.gmra.mxu0 %v655
        %v792 = vpop.f32.mrf.mxu0
        %v793 = vadd.f32 %v583, %v792
        %v794 = vpop.f32.mrf.mxu0
        %v795 = vadd.f32 %v585, %v794
        %796 = vmatprep.mubr.f32.mxu0 0.0
        %797 = vmatmul.mubr.f32.gmra.mxu0 %v658
        %v798 = vpop.f32.mrf.mxu0
        %v799 = vadd.f32 %v589, %v798
        %v800 = vpop.f32.mrf.mxu0
        %v801 = vadd.f32 %v591, %v800
        %802 = vmatprep.mubr.f32.mxu0 0.0
        %803 = vmatmul.mubr.f32.gmra.mxu0 %v661
        %v804 = vpop.f32.mrf.mxu0
        %v805 = vadd.f32 %v595, %v804
        %v806 = vpop.f32.mrf.mxu0
        %v807 = vadd.f32 %v597, %v806
        %808 = vmatprep.mubr.f32.mxu0 0.0
        %809 = vmatmul.mubr.f32.gmra.mxu0 %v664
        %v810 = vpop.f32.mrf.mxu0
        %v811 = vadd.f32 %v601, %v810
        %v812 = vpop.f32.mrf.mxu0
        %v813 = vadd.f32 %v603, %v812
        %814 = vmatprep.mubr.f32.mxu0 0.0
        %815 = vmatmul.mubr.f32.gmra.mxu0 %v667
        %v816 = vpop.f32.mrf.mxu0
        %v817 = vadd.f32 %v607, %v816
        %v818 = vpop.f32.mrf.mxu0
        %v819 = vadd.f32 %v609, %v818
        %820 = vmatprep.mubr.f32.mxu0 0.0
        %821 = vmatmul.mubr.f32.gmra.mxu0 %v670
        %v822 = vpop.f32.mrf.mxu0
        %v823 = vadd.f32 %v613, %v822
        %v824 = vpop.f32.mrf.mxu0
        %v825 = vadd.f32 %v615, %v824
        %826 = vmatprep.mubr.f32.mxu0 0.0
        %827 = vmatmul.mubr.f32.gmra.mxu0 %v673
        %v828 = vpop.f32.mrf.mxu0
        %v829 = vadd.f32 %v619, %v828
        %v830 = vpop.f32.mrf.mxu0
        %v831 = vadd.f32 %v621, %v830
        %832 = vmatprep.mubr.f32.mxu0 0.0
        %833 = vmatmul.mubr.f32.gmra.mxu0 %v676
        %v834 = vpop.f32.mrf.mxu0
        %v835 = vadd.f32 %v625, %v834
        %v836 = vpop.f32.mrf.mxu0
        %v837 = vadd.f32 %v627, %v836
        %838 = vdwg.mxu0
        %v839 = vld [vmem:[%s4] sm:$0xff]
        %v840 = vld [vmem:[%s4 + $0x8] sm:$0xff]
        %v841 = vld [vmem:[%s4 + $0x10] sm:$0xff]
        %v842 = vld [vmem:[%s4 + $0x18] sm:$0xff]
        %v843 = vld [vmem:[%s4 + $0x20] sm:$0xff]
        %v844 = vld [vmem:[%s4 + $0x28] sm:$0xff]
        %v845 = vld [vmem:[%s4 + $0x30] sm:$0xff]
        %v846 = vld [vmem:[%s4 + $0x38] sm:$0xff]
        %v847 = vld [vmem:[%s4 + $0x40] sm:$0xff]
        %v848 = vld [vmem:[%s4 + $0x48] sm:$0xff]
        %v849 = vld [vmem:[%s4 + $0x50] sm:$0xff]
        %v850 = vld [vmem:[%s4 + $0x58] sm:$0xff]
        %v851 = vld [vmem:[%s4 + $0x60] sm:$0xff]
        %v852 = vld [vmem:[%s4 + $0x68] sm:$0xff]
        %v853 = vld [vmem:[%s4 + $0x70] sm:$0xff]
        %v854 = vld [vmem:[%s4 + $0x78] sm:$0xff]
        %856 = vset.pattern.permute.xlu0 0
        %857 = vperm.xlu0 %856, %v839
        %v858 = vpop.permute.xlu0 %857
        %861 = vset.pattern.permute.xlu0 0
        %862 = vperm.xlu0 %861, %v840
        %v863 = vpop.permute.xlu0 %862
        %866 = vset.pattern.permute.xlu0 0
        %867 = vperm.xlu0 %866, %v841
        %v868 = vpop.permute.xlu0 %867
        %871 = vset.pattern.permute.xlu0 0
        %872 = vperm.xlu0 %871, %v842
        %v873 = vpop.permute.xlu0 %872
        %876 = vset.pattern.permute.xlu0 0
        %877 = vperm.xlu0 %876, %v843
        %v878 = vpop.permute.xlu0 %877
        %881 = vset.pattern.permute.xlu0 0
        %882 = vperm.xlu0 %881, %v844
        %v883 = vpop.permute.xlu0 %882
        %886 = vset.pattern.permute.xlu0 0
        %887 = vperm.xlu0 %886, %v845
        %v888 = vpop.permute.xlu0 %887
        %891 = vset.pattern.permute.xlu0 0
        %892 = vperm.xlu0 %891, %v846
        %v893 = vpop.permute.xlu0 %892
        %896 = vset.pattern.permute.xlu0 0
        %897 = vperm.xlu0 %896, %v847
        %v898 = vpop.permute.xlu0 %897
        %901 = vset.pattern.permute.xlu0 0
        %902 = vperm.xlu0 %901, %v848
        %v903 = vpop.permute.xlu0 %902
        %906 = vset.pattern.permute.xlu0 0
        %907 = vperm.xlu0 %906, %v849
        %v908 = vpop.permute.xlu0 %907
        %911 = vset.pattern.permute.xlu0 0
        %912 = vperm.xlu0 %911, %v850
        %v913 = vpop.permute.xlu0 %912
        %916 = vset.pattern.permute.xlu0 0
        %917 = vperm.xlu0 %916, %v851
        %v918 = vpop.permute.xlu0 %917
        %921 = vset.pattern.permute.xlu0 0
        %922 = vperm.xlu0 %921, %v852
        %v923 = vpop.permute.xlu0 %922
        %926 = vset.pattern.permute.xlu0 0
        %927 = vperm.xlu0 %926, %v853
        %v928 = vpop.permute.xlu0 %927
        %931 = vset.pattern.permute.xlu0 0
        %932 = vperm.xlu0 %931, %v854
        %v933 = vpop.permute.xlu0 %932
        %v935 = vadd.f32 %v745, %v858
        %v936 = vadd.f32 %v747, %v858
        %v937 = vadd.f32 %v751, %v863
        %v938 = vadd.f32 %v753, %v863
        %v939 = vadd.f32 %v757, %v868
        %v940 = vadd.f32 %v759, %v868
        %v941 = vadd.f32 %v763, %v873
        %v942 = vadd.f32 %v765, %v873
        %v943 = vadd.f32 %v769, %v878
        %v944 = vadd.f32 %v771, %v878
        %v945 = vadd.f32 %v775, %v883
        %v946 = vadd.f32 %v777, %v883
        %v947 = vadd.f32 %v781, %v888
        %v948 = vadd.f32 %v783, %v888
        %v949 = vadd.f32 %v787, %v893
        %v950 = vadd.f32 %v789, %v893
        %v951 = vadd.f32 %v793, %v898
        %v952 = vadd.f32 %v795, %v898
        %v953 = vadd.f32 %v799, %v903
        %v954 = vadd.f32 %v801, %v903
        %v955 = vadd.f32 %v805, %v908
        %v956 = vadd.f32 %v807, %v908
        %v957 = vadd.f32 %v811, %v913
        %v958 = vadd.f32 %v813, %v913
        %v959 = vadd.f32 %v817, %v918
        %v960 = vadd.f32 %v819, %v918
        %v961 = vadd.f32 %v823, %v923
        %v962 = vadd.f32 %v825, %v923
        %v963 = vadd.f32 %v829, %v928
        %v964 = vadd.f32 %v831, %v928
        %v965 = vadd.f32 %v835, %v933
        %v966 = vadd.f32 %v837, %v933
        %v967 = vmax.f32 %v935, 0.0
        %v968 = vmax.f32 %v936, 0.0
        %v969 = vmax.f32 %v937, 0.0
        %v970 = vmax.f32 %v938, 0.0
        %v971 = vmax.f32 %v939, 0.0
        %v972 = vmax.f32 %v940, 0.0
        %v973 = vmax.f32 %v941, 0.0
        %v974 = vmax.f32 %v942, 0.0
        %v975 = vmax.f32 %v943, 0.0
        %v976 = vmax.f32 %v944, 0.0
        %v977 = vmax.f32 %v945, 0.0
        %v978 = vmax.f32 %v946, 0.0
        %v979 = vmax.f32 %v947, 0.0
        %v980 = vmax.f32 %v948, 0.0
        %v981 = vmax.f32 %v949, 0.0
        %v982 = vmax.f32 %v950, 0.0
        %v983 = vmax.f32 %v951, 0.0
        %v984 = vmax.f32 %v952, 0.0
        %v985 = vmax.f32 %v953, 0.0
        %v986 = vmax.f32 %v954, 0.0
        %v987 = vmax.f32 %v955, 0.0
        %v988 = vmax.f32 %v956, 0.0
        %v989 = vmax.f32 %v957, 0.0
        %v990 = vmax.f32 %v958, 0.0
        %v991 = vmax.f32 %v959, 0.0
        %v992 = vmax.f32 %v960, 0.0
        %v993 = vmax.f32 %v961, 0.0
        %v994 = vmax.f32 %v962, 0.0
        %v995 = vmax.f32 %v963, 0.0
        %v996 = vmax.f32 %v964, 0.0
        %v997 = vmax.f32 %v965, 0.0
        %v998 = vmax.f32 %v966, 0.0
        %v999 = vsub.f32 %v983, %v991
        %v1000 = vsub.f32 %v984, %v992
        %v1001 = vsub.f32 %v985, %v993
        %v1002 = vsub.f32 %v986, %v994
        %v1003 = vsub.f32 %v987, %v995
        %v1004 = vsub.f32 %v988, %v996
        %v1005 = vsub.f32 %v989, %v997
        %v1006 = vsub.f32 %v990, %v998
        %v1007 = vmul.f32 %v967, %v999
        %v1008 = vmul.f32 %v968, %v1000
        %v1009 = vmul.f32 %v969, %v1001
        %v1010 = vmul.f32 %v970, %v1002
        %v1011 = vmul.f32 %v971, %v1003
        %v1012 = vmul.f32 %v972, %v1004
        %v1013 = vmul.f32 %v973, %v1005
        %v1014 = vmul.f32 %v974, %v1006
        %v1015 = vmul.f32 %v975, %v999
        %v1016 = vmul.f32 %v976, %v1000
        %v1017 = vmul.f32 %v977, %v1001
        %v1018 = vmul.f32 %v978, %v1002
        %v1019 = vmul.f32 %v979, %v1003
        %v1020 = vmul.f32 %v980, %v1004
        %v1021 = vmul.f32 %v981, %v1005
        %v1022 = vmul.f32 %v982, %v1006
        %v1023 = vadd.f32 %v1007, %v991
        %v1024 = vadd.f32 %v1008, %v992
        %v1025 = vadd.f32 %v1009, %v993
        %v1026 = vadd.f32 %v1010, %v994
        %v1027 = vadd.f32 %v1011, %v995
        %v1028 = vadd.f32 %v1012, %v996
        %v1029 = vadd.f32 %v1013, %v997
        %v1030 = vadd.f32 %v1014, %v998
        %v1031 = vadd.f32 %v1015, %v991
        %v1032 = vadd.f32 %v1016, %v992
        %v1033 = vadd.f32 %v1017, %v993
        %v1034 = vadd.f32 %v1018, %v994
        %v1035 = vadd.f32 %v1019, %v995
        %v1036 = vadd.f32 %v1020, %v996
        %v1037 = vadd.f32 %v1021, %v997
        %v1038 = vadd.f32 %v1022, %v998
        %v1039 = vld [vmem:[%s5] sm:$0xff]
        %v1040 = vld [vmem:[%s5 + $0x8] sm:$0xff]
        %v1041 = vld [vmem:[%s5 + $0x10] sm:$0xff]
        %v1042 = vld [vmem:[%s5 + $0x18] sm:$0xff]
        %v1043 = vld [vmem:[%s5 + $0x20] sm:$0xff]
        %v1044 = vld [vmem:[%s5 + $0x28] sm:$0xff]
        %v1045 = vld [vmem:[%s5 + $0x30] sm:$0xff]
        %v1046 = vld [vmem:[%s5 + $0x38] sm:$0xff]
        %v1047 = vld [vmem:[%s6] sm:$0xff]
        %v1048 = vld [vmem:[%s6 + $0x8] sm:$0xff]
        %v1049 = vld [vmem:[%s6 + $0x10] sm:$0xff]
        %v1050 = vld [vmem:[%s6 + $0x18] sm:$0xff]
        %v1051 = vld [vmem:[%s6 + $0x20] sm:$0xff]
        %v1052 = vld [vmem:[%s6 + $0x28] sm:$0xff]
        %v1053 = vld [vmem:[%s6 + $0x30] sm:$0xff]
        %v1054 = vld [vmem:[%s6 + $0x38] sm:$0xff]
        %1056 = vset.pattern.permute.xlu0 0
        %1057 = vperm.xlu0 %1056, %v1047
        %v1058 = vpop.permute.xlu0 %1057
        %1061 = vset.pattern.permute.xlu0 0
        %1062 = vperm.xlu0 %1061, %v1048
        %v1063 = vpop.permute.xlu0 %1062
        %1066 = vset.pattern.permute.xlu0 0
        %1067 = vperm.xlu0 %1066, %v1049
        %v1068 = vpop.permute.xlu0 %1067
        %1071 = vset.pattern.permute.xlu0 0
        %1072 = vperm.xlu0 %1071, %v1050
        %v1073 = vpop.permute.xlu0 %1072
        %1076 = vset.pattern.permute.xlu0 0
        %1077 = vperm.xlu0 %1076, %v1051
        %v1078 = vpop.permute.xlu0 %1077
        %1081 = vset.pattern.permute.xlu0 0
        %1082 = vperm.xlu0 %1081, %v1052
        %v1083 = vpop.permute.xlu0 %1082
        %1086 = vset.pattern.permute.xlu0 0
        %1087 = vperm.xlu0 %1086, %v1053
        %v1088 = vpop.permute.xlu0 %1087
        %1091 = vset.pattern.permute.xlu0 0
        %1092 = vperm.xlu0 %1091, %v1054
        %v1093 = vpop.permute.xlu0 %1092
        %vm1095 = vcmask 523264
        %v1097 = vsel %vm1095, %v1039, 0
        %v1100 = vsel %vm1095, %v1040, 0
        %v1103 = vsel %vm1095, %v1041, 0
        %v1106 = vsel %vm1095, %v1042, 0
        %v1109 = vsel %vm1095, %v1043, 0
        %v1112 = vsel %vm1095, %v1044, 0
        %v1115 = vsel %vm1095, %v1045, 0
        %v1118 = vsel %vm1095, %v1046, 0
        %1120 = vmatprep.subr.mxu0 0.0
        %1121 = vmatpush1.msra.mxu0 0.0
        %1122 = vmatprep.subr.mxu0 0.0
        %1123 = vmatpush1.msra.mxu0 0.0
        %1124 = vmatprep.subr.mxu0 0.0
        %1125 = vmatpush1.msra.mxu0 0.0
        %1126 = vmatprep.subr.mxu0 0.0
        %1127 = vmatpush1.msra.mxu0 0.0
        %1128 = vmatprep.subr.mxu0 0.0
        %1129 = vmatpush1.msra.mxu0 0.0
        %1130 = vmatprep.subr.mxu0 0.0
        %1131 = vmatpush1.msra.mxu0 0.0
        %1132 = vmatprep.subr.mxu0 0.0
        %1133 = vmatpush1.msra.mxu0 0.0
        %1134 = vmatprep.subr.mxu0 0.0
        %1135 = vmatpush1.msra.mxu0 0.0
        %1136 = vmatprep.subr.mxu0 %v1038
        %1137 = vmatpush1.msra.mxu0 %v1037
        %1138 = vmatprep.subr.mxu0 %v1036
        %1139 = vmatpush1.msra.mxu0 %v1035
        %1140 = vmatprep.subr.mxu0 %v1034
        %1141 = vmatpush1.msra.mxu0 %v1033
        %1142 = vmatprep.subr.mxu0 %v1032
        %1143 = vmatpush1.msra.mxu0 %v1031
        %1144 = vmatprep.subr.mxu0 %v1030
        %1145 = vmatpush1.msra.mxu0 %v1029
        %1146 = vmatprep.subr.mxu0 %v1028
        %1147 = vmatpush1.msra.mxu0 %v1027
        %1148 = vmatprep.subr.mxu0 %v1026
        %1149 = vmatpush1.msra.mxu0 %v1025
        %1150 = vmatprep.subr.mxu0 %v1024
        %1151 = vmatpush1.msra.mxu0 %v1023
        %1152 = vmatprep.subr.mxu0 0.0
        %1153 = vmatpush2.msra.mxu0 0.0
        %1154 = vmatprep.subr.mxu0 0.0
        %1155 = vmatpush2.msra.mxu0 0.0
        %1156 = vmatprep.subr.mxu0 0.0
        %1157 = vmatpush2.msra.mxu0 0.0
        %1158 = vmatprep.subr.mxu0 0.0
        %1159 = vmatpush2.msra.mxu0 0.0
        %1160 = vmatprep.subr.mxu0 0.0
        %1161 = vmatpush2.msra.mxu0 0.0
        %1162 = vmatprep.subr.mxu0 0.0
        %1163 = vmatpush2.msra.mxu0 0.0
        %1164 = vmatprep.subr.mxu0 0.0
        %1165 = vmatpush2.msra.mxu0 0.0
        %1166 = vmatprep.subr.mxu0 0.0
        %1167 = vmatpush2.msra.mxu0 0.0
        %1168 = vmatprep.subr.mxu0 0.0
        %1169 = vmatpush2.msra.mxu0 0.0
        %1170 = vmatprep.subr.mxu0 0.0
        %1171 = vmatpush2.msra.mxu0 0.0
        %1172 = vmatprep.subr.mxu0 0.0
        %1173 = vmatpush2.msra.mxu0 0.0
        %1174 = vmatprep.subr.mxu0 0.0
        %1175 = vmatpush2.msra.mxu0 0.0
        %1176 = vmatprep.subr.mxu0 0.0
        %1177 = vmatpush2.msra.mxu0 0.0
        %1178 = vmatprep.subr.mxu0 0.0
        %1179 = vmatpush2.msra.mxu0 0.0
        %1180 = vmatprep.subr.mxu0 0.0
        %1181 = vmatpush2.msra.mxu0 0.0
        %1182 = vmatprep.subr.mxu0 0.0
        %1183 = vmatpush2.msra.mxu0 0.0
        %1184 = vmatprep.mubr.f32.mxu0 0.0
        %1185 = vmatmul.mubr.f32.gmra.mxu0 %v1097
        %v1186 = vpop.f32.mrf.mxu0
        %v1187 = vadd.f32 %v1058, %v1186
        %v1188 = vpop.f32.mrf.mxu0
        %v1189 = vadd.f32 %v1058, %v1188
        %1190 = vmatprep.mubr.f32.mxu0 0.0
        %1191 = vmatmul.mubr.f32.gmra.mxu0 %v1100
        %v1192 = vpop.f32.mrf.mxu0
        %v1193 = vadd.f32 %v1063, %v1192
        %v1194 = vpop.f32.mrf.mxu0
        %v1195 = vadd.f32 %v1063, %v1194
        %1196 = vmatprep.mubr.f32.mxu0 0.0
        %1197 = vmatmul.mubr.f32.gmra.mxu0 %v1103
        %v1198 = vpop.f32.mrf.mxu0
        %v1199 = vadd.f32 %v1068, %v1198
        %v1200 = vpop.f32.mrf.mxu0
        %v1201 = vadd.f32 %v1068, %v1200
        %1202 = vmatprep.mubr.f32.mxu0 0.0
        %1203 = vmatmul.mubr.f32.gmra.mxu0 %v1106
        %v1204 = vpop.f32.mrf.mxu0
        %v1205 = vadd.f32 %v1073, %v1204
        %v1206 = vpop.f32.mrf.mxu0
        %v1207 = vadd.f32 %v1073, %v1206
        %1208 = vmatprep.mubr.f32.mxu0 0.0
        %1209 = vmatmul.mubr.f32.gmra.mxu0 %v1109
        %v1210 = vpop.f32.mrf.mxu0
        %v1211 = vadd.f32 %v1078, %v1210
        %v1212 = vpop.f32.mrf.mxu0
        %v1213 = vadd.f32 %v1078, %v1212
        %1214 = vmatprep.mubr.f32.mxu0 0.0
        %1215 = vmatmul.mubr.f32.gmra.mxu0 %v1112
        %v1216 = vpop.f32.mrf.mxu0
        %v1217 = vadd.f32 %v1083, %v1216
        %v1218 = vpop.f32.mrf.mxu0
        %v1219 = vadd.f32 %v1083, %v1218
        %1220 = vmatprep.mubr.f32.mxu0 0.0
        %1221 = vmatmul.mubr.f32.gmra.mxu0 %v1115
        %v1222 = vpop.f32.mrf.mxu0
        %v1223 = vadd.f32 %v1088, %v1222
        %v1224 = vpop.f32.mrf.mxu0
        %v1225 = vadd.f32 %v1088, %v1224
        %1226 = vmatprep.mubr.f32.mxu0 0.0
        %1227 = vmatmul.mubr.f32.gmra.mxu0 %v1118
        %v1228 = vpop.f32.mrf.mxu0
        %v1229 = vadd.f32 %v1093, %v1228
        %v1230 = vpop.f32.mrf.mxu0
        %v1231 = vadd.f32 %v1093, %v1230
        %1232 = vdwg.mxu0
        %v1233 = vmax.f32 %v1187, 0.0
        %v1234 = vmax.f32 %v1189, 0.0
        %v1235 = vmax.f32 %v1193, 0.0
        %v1236 = vmax.f32 %v1195, 0.0
        %v1237 = vmax.f32 %v1199, 0.0
        %v1238 = vmax.f32 %v1201, 0.0
        %v1239 = vmax.f32 %v1205, 0.0
        %v1240 = vmax.f32 %v1207, 0.0
        %v1241 = vmax.f32 %v1211, 0.0
        %v1242 = vmax.f32 %v1213, 0.0
        %v1243 = vmax.f32 %v1217, 0.0
        %v1244 = vmax.f32 %v1219, 0.0
        %v1245 = vmax.f32 %v1223, 0.0
        %v1246 = vmax.f32 %v1225, 0.0
        %v1247 = vmax.f32 %v1229, 0.0
        %v1248 = vmax.f32 %v1231, 0.0
        %v1249 = vmul.f32 %v1233, %v999
        %v1250 = vmul.f32 %v1234, %v1000
        %v1251 = vmul.f32 %v1235, %v1001
        %v1252 = vmul.f32 %v1236, %v1002
        %v1253 = vmul.f32 %v1237, %v1003
        %v1254 = vmul.f32 %v1238, %v1004
        %v1255 = vmul.f32 %v1239, %v1005
        %v1256 = vmul.f32 %v1240, %v1006
        %v1257 = vmul.f32 %v1241, %v999
        %v1258 = vmul.f32 %v1242, %v1000
        %v1259 = vmul.f32 %v1243, %v1001
        %v1260 = vmul.f32 %v1244, %v1002
        %v1261 = vmul.f32 %v1245, %v1003
        %v1262 = vmul.f32 %v1246, %v1004
        %v1263 = vmul.f32 %v1247, %v1005
        %v1264 = vmul.f32 %v1248, %v1006
        %v1265 = vadd.f32 %v1249, %v991
        %v1266 = vadd.f32 %v1250, %v992
        %v1267 = vadd.f32 %v1251, %v993
        %v1268 = vadd.f32 %v1252, %v994
        %v1269 = vadd.f32 %v1253, %v995
        %v1270 = vadd.f32 %v1254, %v996
        %v1271 = vadd.f32 %v1255, %v997
        %v1272 = vadd.f32 %v1256, %v998
        %v1273 = vadd.f32 %v1257, %v991
        %v1274 = vadd.f32 %v1258, %v992
        %v1275 = vadd.f32 %v1259, %v993
        %v1276 = vadd.f32 %v1260, %v994
        %v1277 = vadd.f32 %v1261, %v995
        %v1278 = vadd.f32 %v1262, %v996
        %v1279 = vadd.f32 %v1263, %v997
        %v1280 = vadd.f32 %v1264, %v998
        %s1281 = scalar_lea.vmem %s5, 64
        %v1282 = vld [vmem:[%s1281] sm:$0xff]
        %v1283 = vld [vmem:[%s1281 + $0x8] sm:$0xff]
        %v1284 = vld [vmem:[%s1281 + $0x10] sm:$0xff]
        %v1285 = vld [vmem:[%s1281 + $0x18] sm:$0xff]
        %v1286 = vld [vmem:[%s1281 + $0x20] sm:$0xff]
        %v1287 = vld [vmem:[%s1281 + $0x28] sm:$0xff]
        %v1288 = vld [vmem:[%s1281 + $0x30] sm:$0xff]
        %v1289 = vld [vmem:[%s1281 + $0x38] sm:$0xff]
        %s1290 = scalar_lea.vmem %s6, 64
        %v1291 = vld [vmem:[%s1290] sm:$0xff]
        %v1292 = vld [vmem:[%s1290 + $0x8] sm:$0xff]
        %v1293 = vld [vmem:[%s1290 + $0x10] sm:$0xff]
        %v1294 = vld [vmem:[%s1290 + $0x18] sm:$0xff]
        %v1295 = vld [vmem:[%s1290 + $0x20] sm:$0xff]
        %v1296 = vld [vmem:[%s1290 + $0x28] sm:$0xff]
        %v1297 = vld [vmem:[%s1290 + $0x30] sm:$0xff]
        %v1298 = vld [vmem:[%s1290 + $0x38] sm:$0xff]
        %1300 = vset.pattern.permute.xlu0 0
        %1301 = vperm.xlu0 %1300, %v1291
        %v1302 = vpop.permute.xlu0 %1301
        %1305 = vset.pattern.permute.xlu0 0
        %1306 = vperm.xlu0 %1305, %v1292
        %v1307 = vpop.permute.xlu0 %1306
        %1310 = vset.pattern.permute.xlu0 0
        %1311 = vperm.xlu0 %1310, %v1293
        %v1312 = vpop.permute.xlu0 %1311
        %1315 = vset.pattern.permute.xlu0 0
        %1316 = vperm.xlu0 %1315, %v1294
        %v1317 = vpop.permute.xlu0 %1316
        %1320 = vset.pattern.permute.xlu0 0
        %1321 = vperm.xlu0 %1320, %v1295
        %v1322 = vpop.permute.xlu0 %1321
        %1325 = vset.pattern.permute.xlu0 0
        %1326 = vperm.xlu0 %1325, %v1296
        %v1327 = vpop.permute.xlu0 %1326
        %1330 = vset.pattern.permute.xlu0 0
        %1331 = vperm.xlu0 %1330, %v1297
        %v1332 = vpop.permute.xlu0 %1331
        %1335 = vset.pattern.permute.xlu0 0
        %1336 = vperm.xlu0 %1335, %v1298
        %v1337 = vpop.permute.xlu0 %1336
        %v1340 = vsel %vm1095, %v1282, 0
        %v1343 = vsel %vm1095, %v1283, 0
        %v1346 = vsel %vm1095, %v1284, 0
        %v1349 = vsel %vm1095, %v1285, 0
        %v1352 = vsel %vm1095, %v1286, 0
        %v1355 = vsel %vm1095, %v1287, 0
        %v1358 = vsel %vm1095, %v1288, 0
        %v1361 = vsel %vm1095, %v1289, 0
        %1363 = vmatprep.subr.mxu0 0.0
        %1364 = vmatpush1.msra.mxu0 0.0
        %1365 = vmatprep.subr.mxu0 0.0
        %1366 = vmatpush1.msra.mxu0 0.0
        %1367 = vmatprep.subr.mxu0 0.0
        %1368 = vmatpush1.msra.mxu0 0.0
        %1369 = vmatprep.subr.mxu0 0.0
        %1370 = vmatpush1.msra.mxu0 0.0
        %1371 = vmatprep.subr.mxu0 0.0
        %1372 = vmatpush1.msra.mxu0 0.0
        %1373 = vmatprep.subr.mxu0 0.0
        %1374 = vmatpush1.msra.mxu0 0.0
        %1375 = vmatprep.subr.mxu0 0.0
        %1376 = vmatpush1.msra.mxu0 0.0
        %1377 = vmatprep.subr.mxu0 0.0
        %1378 = vmatpush1.msra.mxu0 0.0
        %1379 = vmatprep.subr.mxu0 %v1280
        %1380 = vmatpush1.msra.mxu0 %v1279
        %1381 = vmatprep.subr.mxu0 %v1278
        %1382 = vmatpush1.msra.mxu0 %v1277
        %1383 = vmatprep.subr.mxu0 %v1276
        %1384 = vmatpush1.msra.mxu0 %v1275
        %1385 = vmatprep.subr.mxu0 %v1274
        %1386 = vmatpush1.msra.mxu0 %v1273
        %1387 = vmatprep.subr.mxu0 %v1272
        %1388 = vmatpush1.msra.mxu0 %v1271
        %1389 = vmatprep.subr.mxu0 %v1270
        %1390 = vmatpush1.msra.mxu0 %v1269
        %1391 = vmatprep.subr.mxu0 %v1268
        %1392 = vmatpush1.msra.mxu0 %v1267
        %1393 = vmatprep.subr.mxu0 %v1266
        %1394 = vmatpush1.msra.mxu0 %v1265
        %1395 = vmatprep.subr.mxu0 0.0
        %1396 = vmatpush2.msra.mxu0 0.0
        %1397 = vmatprep.subr.mxu0 0.0
        %1398 = vmatpush2.msra.mxu0 0.0
        %1399 = vmatprep.subr.mxu0 0.0
        %1400 = vmatpush2.msra.mxu0 0.0
        %1401 = vmatprep.subr.mxu0 0.0
        %1402 = vmatpush2.msra.mxu0 0.0
        %1403 = vmatprep.subr.mxu0 0.0
        %1404 = vmatpush2.msra.mxu0 0.0
        %1405 = vmatprep.subr.mxu0 0.0
        %1406 = vmatpush2.msra.mxu0 0.0
        %1407 = vmatprep.subr.mxu0 0.0
        %1408 = vmatpush2.msra.mxu0 0.0
        %1409 = vmatprep.subr.mxu0 0.0
        %1410 = vmatpush2.msra.mxu0 0.0
        %1411 = vmatprep.subr.mxu0 0.0
        %1412 = vmatpush2.msra.mxu0 0.0
        %1413 = vmatprep.subr.mxu0 0.0
        %1414 = vmatpush2.msra.mxu0 0.0
        %1415 = vmatprep.subr.mxu0 0.0
        %1416 = vmatpush2.msra.mxu0 0.0
        %1417 = vmatprep.subr.mxu0 0.0
        %1418 = vmatpush2.msra.mxu0 0.0
        %1419 = vmatprep.subr.mxu0 0.0
        %1420 = vmatpush2.msra.mxu0 0.0
        %1421 = vmatprep.subr.mxu0 0.0
        %1422 = vmatpush2.msra.mxu0 0.0
        %1423 = vmatprep.subr.mxu0 0.0
        %1424 = vmatpush2.msra.mxu0 0.0
        %1425 = vmatprep.subr.mxu0 0.0
        %1426 = vmatpush2.msra.mxu0 0.0
        %1427 = vmatprep.mubr.f32.mxu0 0.0
        %1428 = vmatmul.mubr.f32.gmra.mxu0 %v1340
        %v1429 = vpop.f32.mrf.mxu0
        %v1430 = vadd.f32 %v1302, %v1429
        %v1431 = vpop.f32.mrf.mxu0
        %v1432 = vadd.f32 %v1302, %v1431
        %1433 = vmatprep.mubr.f32.mxu0 0.0
        %1434 = vmatmul.mubr.f32.gmra.mxu0 %v1343
        %v1435 = vpop.f32.mrf.mxu0
        %v1436 = vadd.f32 %v1307, %v1435
        %v1437 = vpop.f32.mrf.mxu0
        %v1438 = vadd.f32 %v1307, %v1437
        %1439 = vmatprep.mubr.f32.mxu0 0.0
        %1440 = vmatmul.mubr.f32.gmra.mxu0 %v1346
        %v1441 = vpop.f32.mrf.mxu0
        %v1442 = vadd.f32 %v1312, %v1441
        %v1443 = vpop.f32.mrf.mxu0
        %v1444 = vadd.f32 %v1312, %v1443
        %1445 = vmatprep.mubr.f32.mxu0 0.0
        %1446 = vmatmul.mubr.f32.gmra.mxu0 %v1349
        %v1447 = vpop.f32.mrf.mxu0
        %v1448 = vadd.f32 %v1317, %v1447
        %v1449 = vpop.f32.mrf.mxu0
        %v1450 = vadd.f32 %v1317, %v1449
        %1451 = vmatprep.mubr.f32.mxu0 0.0
        %1452 = vmatmul.mubr.f32.gmra.mxu0 %v1352
        %v1453 = vpop.f32.mrf.mxu0
        %v1454 = vadd.f32 %v1322, %v1453
        %v1455 = vpop.f32.mrf.mxu0
        %v1456 = vadd.f32 %v1322, %v1455
        %1457 = vmatprep.mubr.f32.mxu0 0.0
        %1458 = vmatmul.mubr.f32.gmra.mxu0 %v1355
        %v1459 = vpop.f32.mrf.mxu0
        %v1460 = vadd.f32 %v1327, %v1459
        %v1461 = vpop.f32.mrf.mxu0
        %v1462 = vadd.f32 %v1327, %v1461
        %1463 = vmatprep.mubr.f32.mxu0 0.0
        %1464 = vmatmul.mubr.f32.gmra.mxu0 %v1358
        %v1465 = vpop.f32.mrf.mxu0
        %v1466 = vadd.f32 %v1332, %v1465
        %v1467 = vpop.f32.mrf.mxu0
        %v1468 = vadd.f32 %v1332, %v1467
        %1469 = vmatprep.mubr.f32.mxu0 0.0
        %1470 = vmatmul.mubr.f32.gmra.mxu0 %v1361
        %v1471 = vpop.f32.mrf.mxu0
        %v1472 = vadd.f32 %v1337, %v1471
        %v1473 = vpop.f32.mrf.mxu0
        %v1474 = vadd.f32 %v1337, %v1473
        %1475 = vdwg.mxu0
        %v1476 = vmax.f32 %v1430, 0.0
        %v1477 = vmax.f32 %v1432, 0.0
        %v1478 = vmax.f32 %v1436, 0.0
        %v1479 = vmax.f32 %v1438, 0.0
        %v1480 = vmax.f32 %v1442, 0.0
        %v1481 = vmax.f32 %v1444, 0.0
        %v1482 = vmax.f32 %v1448, 0.0
        %v1483 = vmax.f32 %v1450, 0.0
        %v1484 = vmax.f32 %v1454, 0.0
        %v1485 = vmax.f32 %v1456, 0.0
        %v1486 = vmax.f32 %v1460, 0.0
        %v1487 = vmax.f32 %v1462, 0.0
        %v1488 = vmax.f32 %v1466, 0.0
        %v1489 = vmax.f32 %v1468, 0.0
        %v1490 = vmax.f32 %v1472, 0.0
        %v1491 = vmax.f32 %v1474, 0.0
        %v1492 = vmul.f32 %v1476, %v999
        %v1493 = vmul.f32 %v1477, %v1000
        %v1494 = vmul.f32 %v1478, %v1001
        %v1495 = vmul.f32 %v1479, %v1002
        %v1496 = vmul.f32 %v1480, %v1003
        %v1497 = vmul.f32 %v1481, %v1004
        %v1498 = vmul.f32 %v1482, %v1005
        %v1499 = vmul.f32 %v1483, %v1006
        %v1500 = vmul.f32 %v1484, %v999
        %v1501 = vmul.f32 %v1485, %v1000
        %v1502 = vmul.f32 %v1486, %v1001
        %v1503 = vmul.f32 %v1487, %v1002
        %v1504 = vmul.f32 %v1488, %v1003
        %v1505 = vmul.f32 %v1489, %v1004
        %v1506 = vmul.f32 %v1490, %v1005
        %v1507 = vmul.f32 %v1491, %v1006
        %v1508 = vadd.f32 %v1492, %v991
        %v1509 = vadd.f32 %v1493, %v992
        %v1510 = vadd.f32 %v1494, %v993
        %v1511 = vadd.f32 %v1495, %v994
        %v1512 = vadd.f32 %v1496, %v995
        %v1513 = vadd.f32 %v1497, %v996
        %v1514 = vadd.f32 %v1498, %v997
        %v1515 = vadd.f32 %v1499, %v998
        %v1516 = vadd.f32 %v1500, %v991
        %v1517 = vadd.f32 %v1501, %v992
        %v1518 = vadd.f32 %v1502, %v993
        %v1519 = vadd.f32 %v1503, %v994
        %v1520 = vadd.f32 %v1504, %v995
        %v1521 = vadd.f32 %v1505, %v996
        %v1522 = vadd.f32 %v1506, %v997
        %v1523 = vadd.f32 %v1507, %v998
        %v1524 = vld [vmem:[%s7] sm:$0xff]
        %v1525 = vld [vmem:[%s7 + $0x8] sm:$0xff]
        %v1526 = vld [vmem:[%s7 + $0x10] sm:$0xff]
        %v1527 = vld [vmem:[%s7 + $0x18] sm:$0xff]
        %v1528 = vld [vmem:[%s8] sm:$0xff]
        %v1529 = vld [vmem:[%s8 + $0x8] sm:$0xff]
        %v1530 = vld [vmem:[%s8 + $0x10] sm:$0xff]
        %v1531 = vld [vmem:[%s8 + $0x18] sm:$0xff]
        %1533 = vset.pattern.permute.xlu0 0
        %1534 = vperm.xlu0 %1533, %v1528
        %v1535 = vpop.permute.xlu0 %1534
        %1538 = vset.pattern.permute.xlu0 0
        %1539 = vperm.xlu0 %1538, %v1529
        %v1540 = vpop.permute.xlu0 %1539
        %1543 = vset.pattern.permute.xlu0 0
        %1544 = vperm.xlu0 %1543, %v1530
        %v1545 = vpop.permute.xlu0 %1544
        %1548 = vset.pattern.permute.xlu0 0
        %1549 = vperm.xlu0 %1548, %v1531
        %v1550 = vpop.permute.xlu0 %1549
        %v1553 = vsel %vm1095, %v1524, 0
        %v1556 = vsel %vm1095, %v1525, 0
        %v1559 = vsel %vm1095, %v1526, 0
        %v1562 = vsel %vm1095, %v1527, 0
        %1564 = vmatprep.subr.mxu0 0.0
        %1565 = vmatpush1.msra.mxu0 0.0
        %1566 = vmatprep.subr.mxu0 0.0
        %1567 = vmatpush1.msra.mxu0 0.0
        %1568 = vmatprep.subr.mxu0 0.0
        %1569 = vmatpush1.msra.mxu0 0.0
        %1570 = vmatprep.subr.mxu0 0.0
        %1571 = vmatpush1.msra.mxu0 0.0
        %1572 = vmatprep.subr.mxu0 0.0
        %1573 = vmatpush1.msra.mxu0 0.0
        %1574 = vmatprep.subr.mxu0 0.0
        %1575 = vmatpush1.msra.mxu0 0.0
        %1576 = vmatprep.subr.mxu0 0.0
        %1577 = vmatpush1.msra.mxu0 0.0
        %1578 = vmatprep.subr.mxu0 0.0
        %1579 = vmatpush1.msra.mxu0 0.0
        %1580 = vmatprep.subr.mxu0 %v1523
        %1581 = vmatpush1.msra.mxu0 %v1522
        %1582 = vmatprep.subr.mxu0 %v1521
        %1583 = vmatpush1.msra.mxu0 %v1520
        %1584 = vmatprep.subr.mxu0 %v1519
        %1585 = vmatpush1.msra.mxu0 %v1518
        %1586 = vmatprep.subr.mxu0 %v1517
        %1587 = vmatpush1.msra.mxu0 %v1516
        %1588 = vmatprep.subr.mxu0 %v1515
        %1589 = vmatpush1.msra.mxu0 %v1514
        %1590 = vmatprep.subr.mxu0 %v1513
        %1591 = vmatpush1.msra.mxu0 %v1512
        %1592 = vmatprep.subr.mxu0 %v1511
        %1593 = vmatpush1.msra.mxu0 %v1510
        %1594 = vmatprep.subr.mxu0 %v1509
        %1595 = vmatpush1.msra.mxu0 %v1508
        %1596 = vmatprep.subr.mxu0 0.0
        %1597 = vmatpush2.msra.mxu0 0.0
        %1598 = vmatprep.subr.mxu0 0.0
        %1599 = vmatpush2.msra.mxu0 0.0
        %1600 = vmatprep.subr.mxu0 0.0
        %1601 = vmatpush2.msra.mxu0 0.0
        %1602 = vmatprep.subr.mxu0 0.0
        %1603 = vmatpush2.msra.mxu0 0.0
        %1604 = vmatprep.subr.mxu0 0.0
        %1605 = vmatpush2.msra.mxu0 0.0
        %1606 = vmatprep.subr.mxu0 0.0
        %1607 = vmatpush2.msra.mxu0 0.0
        %1608 = vmatprep.subr.mxu0 0.0
        %1609 = vmatpush2.msra.mxu0 0.0
        %1610 = vmatprep.subr.mxu0 0.0
        %1611 = vmatpush2.msra.mxu0 0.0
        %1612 = vmatprep.subr.mxu0 0.0
        %1613 = vmatpush2.msra.mxu0 0.0
        %1614 = vmatprep.subr.mxu0 0.0
        %1615 = vmatpush2.msra.mxu0 0.0
        %1616 = vmatprep.subr.mxu0 0.0
        %1617 = vmatpush2.msra.mxu0 0.0
        %1618 = vmatprep.subr.mxu0 0.0
        %1619 = vmatpush2.msra.mxu0 0.0
        %1620 = vmatprep.subr.mxu0 0.0
        %1621 = vmatpush2.msra.mxu0 0.0
        %1622 = vmatprep.subr.mxu0 0.0
        %1623 = vmatpush2.msra.mxu0 0.0
        %1624 = vmatprep.subr.mxu0 0.0
        %1625 = vmatpush2.msra.mxu0 0.0
        %1626 = vmatprep.subr.mxu0 0.0
        %1627 = vmatpush2.msra.mxu0 0.0
        %1628 = vmatprep.mubr.f32.mxu0 0.0
        %1629 = vmatmul.mubr.f32.gmra.mxu0 %v1553
        %v1630 = vpop.f32.mrf.mxu0
        %v1631 = vadd.f32 %v1535, %v1630
        %v1632 = vpop.f32.mrf.mxu0
        %v1633 = vadd.f32 %v1535, %v1632
        %1634 = vmatprep.mubr.f32.mxu0 0.0
        %1635 = vmatmul.mubr.f32.gmra.mxu0 %v1556
        %v1636 = vpop.f32.mrf.mxu0
        %v1637 = vadd.f32 %v1540, %v1636
        %v1638 = vpop.f32.mrf.mxu0
        %v1639 = vadd.f32 %v1540, %v1638
        %1640 = vmatprep.mubr.f32.mxu0 0.0
        %1641 = vmatmul.mubr.f32.gmra.mxu0 %v1559
        %v1642 = vpop.f32.mrf.mxu0
        %v1643 = vadd.f32 %v1545, %v1642
        %v1644 = vpop.f32.mrf.mxu0
        %v1645 = vadd.f32 %v1545, %v1644
        %1646 = vmatprep.mubr.f32.mxu0 0.0
        %1647 = vmatmul.mubr.f32.gmra.mxu0 %v1562
        %v1648 = vpop.f32.mrf.mxu0
        %v1649 = vadd.f32 %v1550, %v1648
        %v1650 = vpop.f32.mrf.mxu0
        %v1651 = vadd.f32 %v1550, %v1650
        %1652 = vdwg.mxu0
        %v1653 = vmul.f32 %v1631, %v1643
        %v1654 = vmul.f32 %v1633, %v1645
        %v1655 = vmul.f32 %v1637, %v1649
        %v1656 = vmul.f32 %v1639, %v1651
        %v1657 = vadd.f32 %v1653, %v1655
        %v1658 = vrot.slane %v1657, 4
        %v1659 = vadd.f32 %v1657, %v1658
        %v1660 = vrot.slane %v1659, 2
        %v1661 = vadd.f32 %v1659, %v1660
        %v1662 = vrot.slane %v1661, 1
        %v1663 = vadd.f32 %v1661, %v1662
        %v1664 = vadd.f32 %v1654, %v1656
        %v1665 = vrot.slane %v1664, 4
        %v1666 = vadd.f32 %v1664, %v1665
        %v1667 = vrot.slane %v1666, 2
        %v1668 = vadd.f32 %v1666, %v1667
        %v1669 = vrot.slane %v1668, 1
        %v1670 = vadd.f32 %v1668, %v1669
        %v1673 = vcombine.low %v1663, %v1670
        %v1675 = vunpack.c.l.s4 1966171168
        %v1676 = vunpack.c.0.s8 %v1675
        %v1677 = vlaneseq
        %v1678 = vshrl.u32 %v1677, 7
        %v1679 = vsub.s32 %v1676, %v1678
        %v1680 = vrot.slane %v1673, %v1679
        %v1682 = vunpack.c.l.s4 1966171168
        %v1683 = vunpack.c.0.s8 %v1682
        %v1684 = vlaneseq
        %v1685 = vshrl.u32 %v1684, 7
        %v1686 = vsub.s32 %v1683, %v1685
        %v1687 = vrot.slane %v1680, %v1686
        %v1689 = vlaneseq
        %vm1690 = vcmp.ge.s32.totalorder %v1689, 0
        %vm1691 = vcmp.lt.s32.totalorder %v1689, 256
        %vm1692 = vmand %vm1690, %vm1691
        %1693 = vst.msk [vmem:[%s372] sm:$0x3] %vm1692, %v1687
        %s1694 = sand.u32 %s230, 1
        %s1695 = scalar_lea.sflag [#allocation4], %s1694
        %s1696 = sand.u32 %s230, 1
        %s1697 = smul.addr %s1696, 2
        %s1698 = scalar_lea.vmem [#allocation3], %s1697
        // Predicated region
        $region80: #{tpu_custom_call.1} parent=74 // pred_check
          %p1699 = pneg %p240
        $region81: #{tpu_custom_call.1} parent=74 // pred_check_branch
          %1701 = sbr.rel (%p1699) target = $region83
        $region82: #{tpu_custom_call.1} parent=74 // pred_region
          %s1702 = smul.u32 2, %s23
          %s1704 = ssub.s32 32, 32
          %1705 = vsyncadd %s1695, %s1704
          %s1706 = smul.addr %s1702, 16
          %s1707 = scalar_lea.hbm %s9, %s1706
          %s1709 = sshll.u32 %s1698, 4
          %s1710 = int_to_ptr.vmem [resolvable:$true] %s1709
          %1712 = dma.vmem_to_hbm [thread:$0]  %s1710, 32, %s1707, %s1695
        $region83: #{tpu_custom_call.1} parent=74 // pred_fallthru
          _
      $region75: #{tpu_custom_call.1} parent=5 // pred_fallthru
        _
      %p1713 = scmp.le.s32.totalorder 2, %s18
      // Predicated region
      $region84: #{tpu_custom_call.1} parent=5 // pred_check
        %p1714 = pneg %p1713
      $region85: #{tpu_custom_call.1} parent=5 // pred_check_branch
        %1716 = sbr.rel (%p1714) target = $region87
      $region86: #{tpu_custom_call.1} parent=5 // pred_region
        %s1717 = ssub.s32 %s18, 2
        // Predicated region
        $region88: #{tpu_custom_call.1} parent=86 // pred_check
          %p1718 = pneg %p246
        $region89: #{tpu_custom_call.1} parent=86 // pred_check_branch
          %1720 = sbr.rel (%p1718) target = $region91
        $region90: #{tpu_custom_call.1} parent=86 // pred_region
          %s1721 = sand.u32 %s231, 1
          %s1722 = scalar_lea.sflag [#allocation4], %s1721
          %s1723 = sand.u32 %s231, 1
          %s1724 = smul.addr %s1723, 2
          %s1725 = scalar_lea.vmem [#allocation3], %s1724
          %1726 = dma.done %s1722, 32
        $region91: #{tpu_custom_call.1} parent=86 // pred_fallthru
          _
      $region87: #{tpu_custom_call.1} parent=5 // pred_fallthru
        _
    $region6: #{tpu_custom_call.1} parent=1 // loop_footer
      %s22 = sadd.s32 1, %s18
    $region7: #{tpu_custom_call.1} parent=1 // loop_footer_branch
      %17 = sbr.rel target = $region3
    $region8: #{tpu_custom_call.1} parent=1 // loop_exit
      _
    %1727 = vsyncpa [#allocation4], 1
    %s1728 = scalar_lea.sflag [#allocation4], 1
    %1729 = vsyncpa %s1728, 1

</llo_original>
